<compile_context>
chip_gen: v6e
topology: v6e:2x2x1
jax: 0.10.0
libtpu: 0.0.40
codegen_flags: <defaults>
</compile_context>

<pallas_src>
import functools

import jax
import jax.numpy as jnp
from jax.experimental import pallas as pl
from jax.experimental.pallas import tpu as pltpu

_VMEM_LIMIT = 48 * 1024 * 1024  # comfortably under v7x's 64 MiB physical VMEM


def _compiler(sem):
    return pltpu.CompilerParams(dimension_semantics=sem, vmem_limit_bytes=_VMEM_LIMIT)


# ----------------------------- tiling helpers -----------------------------

def _pick(dim, cands):
    for t in cands:
        if dim % t == 0:
            return t
    return dim  # full-extent block


def _tiles(m, n, k):
    if m >= 1024:
        tm = _pick(m, (512, 256, 128, 64, 32, 16, 8))
    else:
        tm = _pick(m, (256, 128, 64, 32, 16, 8))  # keep >=2 M-tiles for megacore when M>=512
    tn = _pick(n, (256, 128))
    tk = k if k <= 1024 else _pick(k, (1024, 768, 576, 512, 384, 256, 128))
    return tm, tn, tk


# ----------------------------- Pallas kernels -----------------------------

def _mm_kernel(x_ref, w_ref, b_ref, o_ref, acc_ref, *, relu):
    # Tiled matmul (BN scale pre-folded into w) + shift + optional ReLU.
    @pl.when(pl.program_id(2) == 0)
    def _():
        acc_ref[...] = jnp.zeros_like(acc_ref)

    acc_ref[...] += jnp.dot(x_ref[...], w_ref[...], preferred_element_type=jnp.float32)

    @pl.when(pl.program_id(2) == pl.num_programs(2) - 1)
    def _():
        y = acc_ref[...] + b_ref[...]
        if relu:
            y = jnp.maximum(y, 0.0)
        o_ref[...] = y.astype(o_ref.dtype)


def _mm_res_kernel(x_ref, w_ref, b_ref, r_ref, o_ref, acc_ref, *, relu):
    # Same as above, plus residual add before the final ReLU.
    @pl.when(pl.program_id(2) == 0)
    def _():
        acc_ref[...] = jnp.zeros_like(acc_ref)

    acc_ref[...] += jnp.dot(x_ref[...], w_ref[...], preferred_element_type=jnp.float32)

    @pl.when(pl.program_id(2) == pl.num_programs(2) - 1)
    def _():
        y = acc_ref[...] + b_ref[...] + r_ref[...].astype(jnp.float32)
        if relu:
            y = jnp.maximum(y, 0.0)
        o_ref[...] = y.astype(o_ref.dtype)


def _mm_dual_kernel(x_ref, w_ref, xd_ref, wd_ref, b_ref, o_ref, *, relu):
    # conv3 (1x1) + fused downsample 1x1 conv (identity branch) + combined shift + ReLU.
    acc = jnp.dot(x_ref[...], w_ref[...], preferred_element_type=jnp.float32)
    acc = acc + jnp.dot(xd_ref[...], wd_ref[...], preferred_element_type=jnp.float32)
    y = acc + b_ref[...]
    if relu:
        y = jnp.maximum(y, 0.0)
    o_ref[...] = y.astype(o_ref.dtype)


def _conv3x3_kernel(x_ref, w_ref, b_ref, o_ref, acc_ref, *, relu, wp):
    # Stride-1 3x3 conv via flat-shift accumulation.
    # x_ref: (1, Lin, Cin)  row-major flattened, zero-padded input (one image)
    # w_ref: (9, Cin, tn)   per-tap weights (BN scale folded), bf16
    # b_ref: (1, tn) f32    BN shift
    # o_ref: (1, rows, tn)  rows = H * (W + 2); valid output lives in cols [0, W)
    rows = o_ref.shape[1]
    acc_ref[...] = jnp.zeros_like(acc_ref)
    for t in range(9):
        off = (t // 3) * wp + (t % 3)
        xs = x_ref[0, pl.ds(off, rows), :]
        acc_ref[...] += jnp.dot(xs, w_ref[t], preferred_element_type=jnp.float32)
    y = acc_ref[...] + b_ref[...]
    if relu:
        y = jnp.maximum(y, 0.0)
    o_ref[0] = y.astype(o_ref.dtype)


def _maxpool_kernel(x_ref, o_ref, *, wp):
    # MaxPool2d(3, stride=2, padding=1): stride-1 window max per even row, in-kernel.
    # x_ref: (1, (H+2)*(W+2), C) -inf padded; o_ref: (1, H//2, W, C); caller takes [:, :, ::2, :].
    ho = o_ref.shape[1]
    w2 = o_ref.shape[2]
    for y in range(ho):
        base = 2 * y * wp
        r = x_ref[0, pl.ds(base, w2), :]
        for t in range(1, 9):
            off = (t // 3) * wp + (t % 3)
            r = jnp.maximum(r, x_ref[0, pl.ds(base + off, w2), :])
        o_ref[0, y] = r


# --------------------------- pallas_call wrappers ---------------------------

@functools.partial(jax.jit, static_argnames=("relu",))
def _matmul_bn(x2d, w2d, b, *, relu):
    m, k = x2d.shape
    n = w2d.shape[1]
    tm, tn, tk = _tiles(m, n, k)
    return pl.pallas_call(
        functools.partial(_mm_kernel, relu=relu),
        out_shape=jax.ShapeDtypeStruct((m, n), jnp.bfloat16),
        grid=(m // tm, n // tn, k // tk),
        in_specs=[
            pl.BlockSpec((tm, tk), lambda i, j, kk: (i, kk)),
            pl.BlockSpec((tk, tn), lambda i, j, kk: (kk, j)),
            pl.BlockSpec((1, tn), lambda i, j, kk: (0, j)),
        ],
        out_specs=pl.BlockSpec((tm, tn), lambda i, j, kk: (i, j)),
        scratch_shapes=[pltpu.VMEM((tm, tn), jnp.float32)],
        compiler_params=_compiler(("parallel", "parallel", "arbitrary")),
    )(x2d, w2d, b)


@functools.partial(jax.jit, static_argnames=("relu",))
def _matmul_bn_res(x2d, w2d, b, r2d, *, relu):
    m, k = x2d.shape
    n = w2d.shape[1]
    tm, tn, tk = _tiles(m, n, k)
    return pl.pallas_call(
        functools.partial(_mm_res_kernel, relu=relu),
        out_shape=jax.ShapeDtypeStruct((m, n), jnp.bfloat16),
        grid=(m // tm, n // tn, k // tk),
        in_specs=[
            pl.BlockSpec((tm, tk), lambda i, j, kk: (i, kk)),
            pl.BlockSpec((tk, tn), lambda i, j, kk: (kk, j)),
            pl.BlockSpec((1, tn), lambda i, j, kk: (0, j)),
            pl.BlockSpec((tm, tn), lambda i, j, kk: (i, j)),
        ],
        out_specs=pl.BlockSpec((tm, tn), lambda i, j, kk: (i, j)),
        scratch_shapes=[pltpu.VMEM((tm, tn), jnp.float32)],
        compiler_params=_compiler(("parallel", "parallel", "arbitrary")),
    )(x2d, w2d, b, r2d)


@functools.partial(jax.jit, static_argnames=("relu",))
def _matmul_dual(x2d, w2d, xd2d, wd2d, b, *, relu):
    m, k1 = x2d.shape
    k2 = xd2d.shape[1]
    n = w2d.shape[1]
    tm, tn, _ = _tiles(m, n, 1)
    return pl.pallas_call(
        functools.partial(_mm_dual_kernel, relu=relu),
        out_shape=jax.ShapeDtypeStruct((m, n), jnp.bfloat16),
        grid=(m // tm, n // tn),
        in_specs=[
            pl.BlockSpec((tm, k1), lambda i, j: (i, 0)),
            pl.BlockSpec((k1, tn), lambda i, j: (0, j)),
            pl.BlockSpec((tm, k2), lambda i, j: (i, 0)),
            pl.BlockSpec((k2, tn), lambda i, j: (0, j)),
            pl.BlockSpec((1, tn), lambda i, j: (0, j)),
        ],
        out_specs=pl.BlockSpec((tm, tn), lambda i, j: (i, j)),
        compiler_params=_compiler(("parallel", "parallel")),
    )(x2d, w2d, xd2d, wd2d, b)


@functools.partial(jax.jit, static_argnames=("relu", "wp", "rows"))
def _conv3x3_s1_call(xf, w9, b, *, relu, wp, rows):
    n, lin, cin = xf.shape
    cout = w9.shape[2]
    tn = _pick(cout, (256, 128))
    return pl.pallas_call(
        functools.partial(_conv3x3_kernel, relu=relu, wp=wp),
        out_shape=jax.ShapeDtypeStruct((n, rows, cout), jnp.bfloat16),
        grid=(n, cout // tn),
        in_specs=[
            pl.BlockSpec((1, lin, cin), lambda bi, c: (bi, 0, 0)),
            pl.BlockSpec((9, cin, tn), lambda bi, c: (0, 0, c)),
            pl.BlockSpec((1, tn), lambda bi, c: (0, c)),
        ],
        out_specs=pl.BlockSpec((1, rows, tn), lambda bi, c: (bi, 0, c)),
        scratch_shapes=[pltpu.VMEM((rows, tn), jnp.float32)],
        compiler_params=_compiler(("parallel", "parallel")),
    )(xf, w9, b)


@functools.partial(jax.jit, static_argnames=("wp", "ho", "wo"))
def _maxpool_call(xf, *, wp, ho, wo):
    n, lin, c = xf.shape
    return pl.pallas_call(
        functools.partial(_maxpool_kernel, wp=wp),
        out_shape=jax.ShapeDtypeStruct((n, ho, 2 * wo, c), xf.dtype),
        grid=(n,),
        in_specs=[pl.BlockSpec((1, lin, c), lambda i: (i, 0, 0))],
        out_specs=pl.BlockSpec((1, ho, 2 * wo, c), lambda i: (i, 0, 0, 0)),
        compiler_params=_compiler(("parallel",)),
    )(xf)


# ------------------------------ conv glue (NHWC) ------------------------------

def _im2col(x, kh, kw, stride, pad):
    n, h, w, c = x.shape
    xp = jnp.pad(x, ((0, 0), (pad, pad), (pad, pad), (0, 0)))
    ho = (h + 2 * pad - kh) // stride + 1
    wo = (w + 2 * pad - kw) // stride + 1
    cols = []
    for i in range(kh):
        for j in range(kw):
            cols.append(xp[:, i:i + stride * ho:stride, j:j + stride * wo:stride, :])
    patches = jnp.stack(cols, axis=3).reshape(n * ho * wo, kh * kw * c)
    return patches, ho, wo


def conv_im2col(x, w2d, b, *, kh, kw, stride, pad, relu):
    # Used only for the 7x7 stem and the three stride-2 3x3 convs.
    n = x.shape[0]
    cout = w2d.shape[1]
    patches, ho, wo = _im2col(x, kh, kw, stride, pad)
    y2d = _matmul_bn(patches, w2d, b, relu=relu)
    return y2d.reshape(n, ho, wo, cout)


def conv1x1(x, w2d, b, *, relu, residual=None):
    n, h, w, cin = x.shape
    cout = w2d.shape[1]
    x2d = x.reshape(n * h * w, cin)
    if residual is None:
        y2d = _matmul_bn(x2d, w2d, b, relu=relu)
    else:
        r2d = residual.reshape(n * h * w, cout)
        y2d = _matmul_bn_res(x2d, w2d, b, r2d, relu=relu)
    return y2d.reshape(n, h, w, cout)


def conv3x3_s1(x, w9, b, *, relu):
    # Stride-1 3x3 conv: flat-shift trick, no im2col materialization in HBM.
    n, h, w, cin = x.shape
    cout = w9.shape[2]
    wp = w + 2
    xp = jnp.pad(x, ((0, 0), (1, 2), (1, 1), (0, 0)))      # extra bottom row for tap overreach
    xf = xp.reshape(n, (h + 3) * wp, cin)
    rows = h * wp
    out = _conv3x3_s1_call(xf, w9, b, relu=relu, wp=wp, rows=rows)
    return out.reshape(n, h, wp, cout)[:, :, :w, :]


def conv1x1_dual(x_main, w3, x_id, wd, b, *, stride, relu):
    # conv3 of a transition block fused with its downsample branch.
    if stride > 1:
        x_id = x_id[:, ::stride, ::stride, :]
    n, h, w, k1 = x_main.shape
    k2 = x_id.shape[3]
    cout = w3.shape[1]
    x2d = x_main.reshape(n * h * w, k1)
    xd2d = x_id.reshape(n * h * w, k2)
    y2d = _matmul_dual(x2d, w3, xd2d, wd, b, relu=relu)
    return y2d.reshape(n, h, w, cout)


def maxpool_3x3_s2(x):
    n, h, w, c = x.shape
    ho, wo, wp = h // 2, w // 2, w + 2
    xp = jnp.pad(x, ((0, 0), (1, 1), (1, 1), (0, 0)), constant_values=-jnp.inf)
    xf = xp.reshape(n, (h + 2) * wp, c)
    out = _maxpool_call(xf, wp=wp, ho=ho, wo=wo)
    return out[:, :, ::2, :]


# --------------------------- parameters (synthetic) ---------------------------

def _he_conv(key, kh, kw, cin, cout):
    std = (2.0 / (kh * kw * cin)) ** 0.5
    return jax.random.normal(key, (kh, kw, cin, cout), jnp.float32) * std


def _bn_affine(key, c, eps=1e-5):
    k1, k2 = jax.random.split(key)
    gamma = 1.0 + 0.01 * jax.random.normal(k1, (c,), jnp.float32)
    beta = 0.01 * jax.random.normal(k2, (c,), jnp.float32)
    running_mean = jnp.zeros((c,), jnp.float32)
    running_var = jnp.ones((c,), jnp.float32)
    scale = gamma / jnp.sqrt(running_var + eps)
    shift = beta - running_mean * scale
    return scale, shift


def _fold(w, scale):
    # Fold BN scale into the conv weight and cast to bf16 (one-time transform).
    return (w * scale.reshape((1,) * (w.ndim - 1) + (-1,))).astype(jnp.bfloat16)


def init_params(key):
    params = {}
    key, k1, k2 = jax.random.split(key, 3)
    w = _he_conv(k1, 7, 7, 1, 64)          # replaces resnet conv1 (1-channel input)
    s, b = _bn_affine(k2, 64)
    params["stem_w"] = _fold(w, s).reshape(49, 64)
    params["stem_b"] = b.reshape(1, 64)

    # ResNet-101: bottleneck blocks [3, 4, 23, 3]
    cfg = [("layer1", 64, 3, 1), ("layer2", 128, 4, 2),
           ("layer3", 256, 23, 2), ("layer4", 512, 3, 2)]
    inplanes = 64
    for name, planes, blocks, stride in cfg:
        layer = []
        for bi in range(blocks):
            key, *ks = jax.random.split(key, 9)
            inp = inplanes if bi == 0 else planes * 4
            st = stride if bi == 0 else 1
            w1 = _he_conv(ks[0], 1, 1, inp, planes)
            s1, b1 = _bn_affine(ks[1], planes)
            w2 = _he_conv(ks[2], 3, 3, planes, planes)
            s2, b2 = _bn_affine(ks[3], planes)
            w3 = _he_conv(ks[4], 1, 1, planes, planes * 4)
            s3, b3 = _bn_affine(ks[5], planes * 4)
            p = {
                "w1": _fold(w1, s1).reshape(inp, planes),
                "b1": b1.reshape(1, planes),
                "b2": b2.reshape(1, planes),
                "w3": _fold(w3, s3).reshape(planes, planes * 4),
                "b3": b3.reshape(1, planes * 4),
                "stride": st,
            }
            w2f = _fold(w2, s2)
            if st == 1:
                p["w2"] = w2f.reshape(9, planes, planes)       # flat-shift kernel layout
            else:
                p["w2"] = w2f.reshape(9 * planes, planes)      # im2col layout
            if bi == 0:
                wd = _he_conv(ks[6], 1, 1, inp, planes * 4)
                sd, bd = _bn_affine(ks[7], planes * 4)
                p["wd"] = _fold(wd, sd).reshape(inp, planes * 4)
                p["b3d"] = (b3 + bd).reshape(1, planes * 4)    # combined shift for fused kernel
            layer.append(p)
        params[name] = layer
        inplanes = planes * 4
    return params


# ------------------------------ forward pass ------------------------------

def bottleneck(x, p):
    st = p["stride"]
    out = conv1x1(x, p["w1"], p["b1"], relu=True)
    if st == 1:
        out = conv3x3_s1(out, p["w2"], p["b2"], relu=True)
    else:
        out = conv_im2col(out, p["w2"], p["b2"], kh=3, kw=3, stride=st, pad=1, relu=True)
    if "wd" in p:
        # conv3 + BN + (downsampled identity) + ReLU in one fused kernel
        out = conv1x1_dual(out, p["w3"], x, p["wd"], p["b3d"], stride=st, relu=True)
    else:
        # conv3 + BN + residual add + ReLU in one fused kernel
        out = conv1x1(out, p["w3"], p["b3"], relu=True, residual=x)
    return out


def resnet102_encoder_forward(params, x_nchw):
    # layout: input NCHW (PyTorch), compute in NHWC/bf16, output NCHW/f32.
    x = jnp.transpose(x_nchw, (0, 2, 3, 1)).astype(jnp.bfloat16)
    # stem: Conv2d(1, 64, 7, stride=2, padding=3, bias=False) + bn1 + relu
    x = conv_im2col(x, params["stem_w"], params["stem_b"],
                    kh=7, kw=7, stride=2, pad=3, relu=True)
    # maxpool 3x3 / stride 2 / pad 1
    x = maxpool_3x3_s2(x)
    # layer1 .. layer4
    for name in ("layer1", "layer2", "layer3", "layer4"):
        for p in params[name]:
            x = bottleneck(x, p)
    return jnp.transpose(x, (0, 3, 1, 2)).astype(jnp.float32)  # (N, 2048, H/32, W/32)


# ---------------------------------- main ----------------------------------

if __name__ == "__main__":
    key = jax.random.PRNGKey(0)
    key, kx = jax.random.split(key)
    # single-channel input (the stem conv expects 1 channel), small spatial size
    x = jax.random.normal(kx, (2, 1, 64, 64), jnp.float32)
    params = init_params(key)

    out = resnet102_encoder_forward(params, x)
    out = jax.block_until_ready(out)

    assert out.shape == (2, 2048, 2, 2), out.shape
    assert bool(jnp.all(jnp.isfinite(out)))
    print("KERNEL_OK")
</pallas_src>

<mosaic_0001>
module attributes {stable_mosaic.version = 11 : i64} {
  func.func @_mm_kernel(%arg0: i32, %arg1: i32, %arg2: i32, %arg3: memref<512x49xbf16, #tpu.memory_space<vmem>>, %arg4: memref<49x64xbf16, #tpu.memory_space<vmem>>, %arg5: memref<1x64xf32, #tpu.memory_space<vmem>>, %arg6: memref<512x64xbf16, #tpu.memory_space<vmem>>, %arg7: memref<512x64xf32, #tpu.memory_space<vmem>>) attributes {dimension_semantics = [#tpu.dimension_semantics<parallel>, #tpu.dimension_semantics<parallel>, #tpu.dimension_semantics<arbitrary>], iteration_bounds = array<i64: 4, 1, 1>, scalar_prefetch = 0 : i64, scratch_operands = 1 : i64, tpu.core_type = #tpu.core_type<tc>, window_params = [{transform_indices = @transform_0, window_bounds = array<i64: 512, 49>}, {transform_indices = @transform_1, window_bounds = array<i64: 49, 64>}, {transform_indices = @transform_2, window_bounds = array<i64: 1, 64>}, {transform_indices = @transform_3, window_bounds = array<i64: 512, 64>}]} {
    %c0_i32 = arith.constant 0 : i32
    %0 = arith.cmpi eq, %arg2, %c0_i32 : i32
    %1 = arith.extui %0 : i1 to i32
    %c0_i32_0 = arith.constant 0 : i32
    %2 = arith.cmpi ne, %1, %c0_i32_0 : i32
    scf.if %2 {
      %cst_10 = arith.constant 0.000000e+00 : f32
      %12 = vector.broadcast %cst_10 : f32 to vector<512x64xf32>
      %c0_11 = arith.constant 0 : index
      %c0_12 = arith.constant 0 : index
      %13 = vector.load %arg7[%c0_11, %c0_12] : memref<512x64xf32, #tpu.memory_space<vmem>>, vector<512x64xf32>
      tpu.vector_store %arg7[%c0_11, %c0_12], %12 {strides = array<i32>} : memref<512x64xf32, #tpu.memory_space<vmem>>, vector<512x64xf32>,
    } else {
    }
    %c0 = arith.constant 0 : index
    %c0_1 = arith.constant 0 : index
    %3 = vector.load %arg7[%c0, %c0_1] : memref<512x64xf32, #tpu.memory_space<vmem>>, vector<512x64xf32>
    %c0_2 = arith.constant 0 : index
    %c0_3 = arith.constant 0 : index
    %4 = vector.load %arg3[%c0_2, %c0_3] : memref<512x49xbf16, #tpu.memory_space<vmem>>, vector<512x49xbf16>
    %c0_4 = arith.constant 0 : index
    %c0_5 = arith.constant 0 : index
    %5 = vector.load %arg4[%c0_4, %c0_5] : memref<49x64xbf16, #tpu.memory_space<vmem>>, vector<49x64xbf16>
    %cst = arith.constant dense<0.000000e+00> : vector<512x64xf32>
    %6 = tpu.matmul %4, %5, %cst {dimension_numbers = #tpu.dot_dimension_numbers<[1], [0], [0], [1], [0, 0, 1, 1], [], []>} : vector<512x49xbf16>, vector<49x64xbf16>, vector<512x64xf32> -> vector<512x64xf32>
    %7 = arith.addf %3, %6 : vector<512x64xf32>
    %c0_6 = arith.constant 0 : index
    %c0_7 = arith.constant 0 : index
    %8 = vector.load %arg7[%c0_6, %c0_7] : memref<512x64xf32, #tpu.memory_space<vmem>>, vector<512x64xf32>
    tpu.vector_store %arg7[%c0_6, %c0_7], %7 {strides = array<i32>} : memref<512x64xf32, #tpu.memory_space<vmem>>, vector<512x64xf32>,
    %c0_i32_8 = arith.constant 0 : i32
    %9 = arith.cmpi eq, %arg2, %c0_i32_8 : i32
    %10 = arith.extui %9 : i1 to i32
    %c0_i32_9 = arith.constant 0 : i32
    %11 = arith.cmpi ne, %10, %c0_i32_9 : i32
    scf.if %11 {
      %c0_10 = arith.constant 0 : index
      %c0_11 = arith.constant 0 : index
      %12 = vector.load %arg7[%c0_10, %c0_11] : memref<512x64xf32, #tpu.memory_space<vmem>>, vector<512x64xf32>
      %c0_12 = arith.constant 0 : index
      %c0_13 = arith.constant 0 : index
      %13 = vector.load %arg5[%c0_12, %c0_13] : memref<1x64xf32, #tpu.memory_space<vmem>>, vector<1x64xf32>
      %14 = vector.broadcast %13 : vector<1x64xf32> to vector<512x64xf32>
      %15 = arith.addf %12, %14 : vector<512x64xf32>
      %cst_14 = arith.constant 0.000000e+00 : f32
      %16 = vector.broadcast %cst_14 : f32 to vector<512x64xf32>
      %17 = arith.maximumf %15, %16 : vector<512x64xf32>
      %18 = arith.truncf %17 : vector<512x64xf32> to vector<512x64xbf16>
      %c0_15 = arith.constant 0 : index
      %c0_16 = arith.constant 0 : index
      %19 = vector.load %arg6[%c0_15, %c0_16] : memref<512x64xbf16, #tpu.memory_space<vmem>>, vector<512x64xbf16>
      tpu.vector_store %arg6[%c0_15, %c0_16], %18 {strides = array<i32>} : memref<512x64xbf16, #tpu.memory_space<vmem>>, vector<512x64xbf16>,
    } else {
    }
    return
  }
  func.func @transform_0(%arg0: i32, %arg1: i32, %arg2: i32) -> (i32, i32) {
    %c0_i32 = arith.constant 0 : i32
    return %arg0, %arg2 : i32, i32
  }
  func.func @transform_1(%arg0: i32, %arg1: i32, %arg2: i32) -> (i32, i32) {
    %c0_i32 = arith.constant 0 : i32
    return %arg2, %arg1 : i32, i32
  }
  func.func @transform_2(%arg0: i32, %arg1: i32, %arg2: i32) -> (i32, i32) {
    %c0_i32 = arith.constant 0 : i32
    %c0_i32_0 = arith.constant 0 : i32
    return %c0_i32, %arg1 : i32, i32
  }
  func.func @transform_3(%arg0: i32, %arg1: i32, %arg2: i32) -> (i32, i32) {
    %c0_i32 = arith.constant 0 : i32
    return %arg0, %arg1 : i32, i32
  }
}

</mosaic_0001>

<llo_original>
// kernel: _matmul_bn.1
$region0: #{_matmul_bn.1}
  #allocation0 [shape = 'u32[]', space=smem, size = 0x4, offset = 0x4, fixed_abs, tag = 'smem constant byte address 0x4 - core index']
  #allocation1 [shape = 'u32[144,128]{1,0:T(1,128)}', space=vmem, size = 0x12000, scoped, tag = 'internal scratch']
  #allocation2 [shape = 'f32[512,64]{1,0:T(8,128)}', space=vmem, size = 0x40000, scoped, tag = 'scratch operand']
  %s0 = inlined_call_operand.vmem [shape: bf16[2048,49], index: 0, kind: input, shape index: {}]
  %s1 = inlined_call_operand.vmem [shape: bf16[49,64], index: 1, kind: input, shape index: {}]
  %s2 = inlined_call_operand.vmem [shape: f32[1,64], index: 2, kind: input, shape index: {}]
  %s3 = inlined_call_operand.vmem [shape: bf16[2048,64], index: 3, kind: output, shape index: {}]
  %s4 = sld [smem:[#allocation0]]
  $region53: #{_matmul_bn.1} parent=0
    _
  %s6 = ssub.s32 1, %s4
  %s7 = scalar_select 0, %s6, %s4
  loop: start=0, step=1, limit=6
  $region2: #{_matmul_bn.1} parent=0 // loop_pre_header
    _
  $region3: #{_matmul_bn.1} parent=0 // loop_header
    %s9 = sphi 0, %s13
    %p10 = scmp.ge.s32.totalorder %s9, 6
    %s16 = sphi 0, %s35
    %s17 = sphi 0, %s31
    %s18 = sphi 0, %s27
    %s19 = sphi 0, %s16
    %s20 = sphi 0, %s17
    %s21 = sphi 0, %s18
    %s22 = sphi 0, %s19
    %s23 = sphi 0, %s20
    %s24 = sphi 0, %s21
    %s40 = sphi 0, %s42
    %s43 = sphi 0, %s40
    %s44 = sphi 0, %s43
    %s60 = sphi 0, %s44
    %s68 = sphi 0, %s70
    %s71 = sphi 0, %s68
    %s72 = sphi 0, %s71
    %s88 = sphi 0, %s72
    %s94 = sphi 0, %s96
    %s97 = sphi 0, %s94
    %s98 = sphi 0, %s97
    %s114 = sphi 0, %s98
    %s122 = sphi 0, %s124
    %s125 = sphi 0, %s122
    %s126 = sphi 0, %s125
    %s142 = sphi 0, %s126
  $region4: #{_matmul_bn.1} parent=0 // loop_header_branch
    %12 = sbr.rel (%p10) target = $region8
  $region5: #{_matmul_bn.1} parent=0 // loop_body
    %s14 = ssub.s32 %s9, 1
    %s15 = ssub.s32 %s9, 2
    %s25 = sadd.s32 1, %s18
    %p26 = scmp.ge.s32.totalorder %s25, 1
    %s27 = scalar_select %p26, 0, %s25
    %s28 = sadd.s32 1, %s17
    %s29 = scalar_select %p26, %s28, %s17
    %p30 = scmp.ge.s32.totalorder %s29, 1
    %s31 = scalar_select %p30, 0, %s29
    %s32 = sadd.s32 1, %s16
    %s33 = scalar_select %p30, %s32, %s16
    %p34 = scmp.ge.s32.totalorder %s33, 4
    %s35 = scalar_select %p34, 0, %s33
    %s36 = ssub.s32 %s16, %s35
    %s37 = ssub.s32 %s18, %s27
    %s38 = sor.u32 %s36, %s37
    %p39 = scmp.eq.s32.totalorder %s38, 0
    %s41 = sadd.s32 %s40, 1
    %s42 = scalar_select %p39, %s40, %s41
    %p45 = pneg %p39
    %p46 = scmp.eq.s32.totalorder %s9, 3
    %p47 = por %p45, %p46
    %p48 = scmp.ne.s32.totalorder %s40, %s43
    %p49 = scmp.eq.s32.totalorder %s9, 0
    %p50 = por %p48, %p49
    %p51 = scmp.ne.s32.totalorder %s40, %s43
    %p52 = scmp.eq.s32.totalorder %s14, 3
    %p53 = por %p51, %p52
    %p54 = scmp.ne.s32.totalorder %s43, %s44
    %p55 = scmp.eq.s32.totalorder %s14, 0
    %p56 = por %p54, %p55
    %p57 = scmp.ne.s32.totalorder %s43, %s44
    %p58 = scmp.eq.s32.totalorder %s15, 3
    %p59 = por %p57, %p58
    %p61 = scmp.ne.s32.totalorder %s44, %s60
    %p62 = scmp.eq.s32.totalorder %s15, 0
    %p63 = por %p61, %p62
    %s64 = ssub.s32 %s18, %s27
    %s65 = ssub.s32 %s17, %s31
    %s66 = sor.u32 %s64, %s65
    %p67 = scmp.eq.s32.totalorder %s66, 0
    %s69 = sadd.s32 %s68, 1
    %s70 = scalar_select %p67, %s68, %s69
    %p73 = pneg %p67
    %p74 = scmp.eq.s32.totalorder %s9, 3
    %p75 = por %p73, %p74
    %p76 = scmp.ne.s32.totalorder %s68, %s71
    %p77 = scmp.eq.s32.totalorder %s9, 0
    %p78 = por %p76, %p77
    %p79 = scmp.ne.s32.totalorder %s68, %s71
    %p80 = scmp.eq.s32.totalorder %s14, 3
    %p81 = por %p79, %p80
    %p82 = scmp.ne.s32.totalorder %s71, %s72
    %p83 = scmp.eq.s32.totalorder %s14, 0
    %p84 = por %p82, %p83
    %p85 = scmp.ne.s32.totalorder %s71, %s72
    %p86 = scmp.eq.s32.totalorder %s15, 3
    %p87 = por %p85, %p86
    %p89 = scmp.ne.s32.totalorder %s72, %s88
    %p90 = scmp.eq.s32.totalorder %s15, 0
    %p91 = por %p89, %p90
    %s92 = ssub.s32 %s17, %s31
    %p93 = scmp.eq.s32.totalorder %s92, 0
    %s95 = sadd.s32 %s94, 1
    %s96 = scalar_select %p93, %s94, %s95
    %p99 = pneg %p93
    %p100 = scmp.eq.s32.totalorder %s9, 3
    %p101 = por %p99, %p100
    %p102 = scmp.ne.s32.totalorder %s94, %s97
    %p103 = scmp.eq.s32.totalorder %s9, 0
    %p104 = por %p102, %p103
    %p105 = scmp.ne.s32.totalorder %s94, %s97
    %p106 = scmp.eq.s32.totalorder %s14, 3
    %p107 = por %p105, %p106
    %p108 = scmp.ne.s32.totalorder %s97, %s98
    %p109 = scmp.eq.s32.totalorder %s14, 0
    %p110 = por %p108, %p109
    %p111 = scmp.ne.s32.totalorder %s97, %s98
    %p112 = scmp.eq.s32.totalorder %s15, 3
    %p113 = por %p111, %p112
    %p115 = scmp.ne.s32.totalorder %s98, %s114
    %p116 = scmp.eq.s32.totalorder %s15, 0
    %p117 = por %p115, %p116
    %s118 = ssub.s32 %s16, %s35
    %s119 = ssub.s32 %s17, %s31
    %s120 = sor.u32 %s118, %s119
    %p121 = scmp.eq.s32.totalorder %s120, 0
    %s123 = sadd.s32 %s122, 1
    %s124 = scalar_select %p121, %s122, %s123
    %p127 = pneg %p121
    %p128 = scmp.eq.s32.totalorder %s9, 3
    %p129 = por %p127, %p128
    %p130 = scmp.ne.s32.totalorder %s122, %s125
    %p131 = scmp.eq.s32.totalorder %s9, 0
    %p132 = por %p130, %p131
    %p133 = scmp.ne.s32.totalorder %s122, %s125
    %p134 = scmp.eq.s32.totalorder %s14, 3
    %p135 = por %p133, %p134
    %p136 = scmp.ne.s32.totalorder %s125, %s126
    %p137 = scmp.eq.s32.totalorder %s14, 0
    %p138 = por %p136, %p137
    %p139 = scmp.ne.s32.totalorder %s125, %s126
    %p140 = scmp.eq.s32.totalorder %s15, 3
    %p141 = por %p139, %p140
    %p143 = scmp.ne.s32.totalorder %s126, %s142
    %p144 = scmp.eq.s32.totalorder %s15, 0
    %p145 = por %p143, %p144
    %p146 = scmp.le.s32.totalorder 1, %s9
    %p147 = scmp.lt.s32.totalorder %s9, 5
    %p148 = pnand %p146, %p147
    %p149 = pneg %p148
    // Predicated region
    $region9: #{_matmul_bn.1} parent=5 // pred_check
      _
    $region10: #{_matmul_bn.1} parent=5 // pred_check_branch
      %151 = sbr.rel (%p148) target = $region12
    $region11: #{_matmul_bn.1} parent=5 // pred_region
      %s152 = ssub.s32 %s9, 1
      // Predicated region
      $region13: #{_matmul_bn.1} parent=11 // pred_check
        %p153 = pneg %p84
      $region14: #{_matmul_bn.1} parent=11 // pred_check_branch
        %155 = sbr.rel (%p153) target = $region16
      $region15: #{_matmul_bn.1} parent=11 // pred_region
        %s156 = smul.u32 7, %s21
        %p157 = scmp.lt.s32.totalorder %s156, 6
        %s158 = scalar_select %p157, %s156, 6
        %p159 = scmp.lt.s32.totalorder %s20, 0
        %s160 = scalar_select %p159, %s20, 0
        %s161 = sadd.s32 %s160, %s158
        %s162 = smul.addr %s161, 4
        %s163 = scalar_lea.vmem %s1, %s162
        %s164 = smul.u32 7, %s21
      $region16: #{_matmul_bn.1} parent=11 // pred_fallthru
        _
      // Predicated region
      $region17: #{_matmul_bn.1} parent=11 // pred_check
        %p165 = pneg %p110
      $region18: #{_matmul_bn.1} parent=11 // pred_check_branch
        %167 = sbr.rel (%p165) target = $region20
      $region19: #{_matmul_bn.1} parent=11 // pred_region
        %p168 = scmp.lt.s32.totalorder %s20, 0
        %s169 = scalar_select %p168, %s20, 0
        %s170 = scalar_lea.vmem %s2, %s169
      $region20: #{_matmul_bn.1} parent=11 // pred_fallthru
        _
    $region12: #{_matmul_bn.1} parent=5 // pred_fallthru
      _
    %p171 = scmp.lt.s32.totalorder %s9, 4
    // Predicated region
    $region21: #{_matmul_bn.1} parent=5 // pred_check
      %p172 = pneg %p171
    $region22: #{_matmul_bn.1} parent=5 // pred_check_branch
      %174 = sbr.rel (%p172) target = $region24
    $region23: #{_matmul_bn.1} parent=5 // pred_region
      // Predicated region
      $region25: #{_matmul_bn.1} parent=23 // pred_check
        %p175 = pneg %p50
      $region26: #{_matmul_bn.1} parent=23 // pred_check_branch
        %177 = sbr.rel (%p175) target = $region28
      $region27: #{_matmul_bn.1} parent=23 // pred_region
        %s178 = smul.u32 64, %s16
        %p179 = scmp.lt.s32.totalorder %s178, 255
        %s180 = scalar_select %p179, %s178, 255
        %p181 = scmp.lt.s32.totalorder %s18, 0
        %s182 = scalar_select %p181, %s18, 0
        %s183 = sadd.s32 %s182, %s180
        %s184 = smul.addr %s183, 4
        %s185 = scalar_lea.vmem %s0, %s184
        %s186 = smul.u32 64, %s16
      $region28: #{_matmul_bn.1} parent=23 // pred_fallthru
        _
    $region24: #{_matmul_bn.1} parent=5 // pred_fallthru
      _
    %p187 = scmp.le.s32.totalorder 1, %s9
    %p188 = scmp.lt.s32.totalorder %s9, 5
    %p189 = pnand %p187, %p188
    %p190 = pneg %p189
    // Predicated region
    $region29: #{_matmul_bn.1} parent=5 // pred_check
      _
    $region30: #{_matmul_bn.1} parent=5 // pred_check_branch
      %192 = sbr.rel (%p189) target = $region32
    $region31: #{_matmul_bn.1} parent=5 // pred_region
      %s193 = ssub.s32 %s9, 1
      %s194 = smul.u32 64, %s19
      %p195 = scmp.lt.s32.totalorder %s194, 255
      %s196 = scalar_select %p195, %s194, 255
      %p197 = scmp.lt.s32.totalorder %s21, 0
      %s198 = scalar_select %p197, %s21, 0
      %s199 = sadd.s32 %s198, %s196
      %s200 = smul.addr %s199, 4
      %s201 = scalar_lea.vmem %s0, %s200
      %p202 = pneg %p56
      %p203 = pneg %p53
      %s204 = smul.u32 7, %s21
      %p205 = scmp.lt.s32.totalorder %s204, 6
      %s206 = scalar_select %p205, %s204, 6
      %p207 = scmp.lt.s32.totalorder %s20, 0
      %s208 = scalar_select %p207, %s20, 0
      %s209 = sadd.s32 %s208, %s206
      %s210 = smul.addr %s209, 4
      %s211 = scalar_lea.vmem %s1, %s210
      %p212 = pneg %p84
      %p213 = pneg %p81
      %p214 = scmp.lt.s32.totalorder %s20, 0
      %s215 = scalar_select %p214, %s20, 0
      %s216 = scalar_lea.vmem %s2, %s215
      %p217 = pneg %p110
      %p218 = pneg %p107
      %p219 = pneg %p138
      %p220 = pneg %p135
      %s221 = smul.u32 64, %s19
      %p222 = scmp.lt.s32.totalorder %s221, 255
      %s223 = scalar_select %p222, %s221, 255
      %p224 = scmp.lt.s32.totalorder %s20, 0
      %s225 = scalar_select %p224, %s20, 0
      %s226 = sadd.s32 %s225, %s223
      %s227 = smul.addr %s226, 4
      %s228 = scalar_lea.vmem %s3, %s227
      %s229 = smul.u32 64, %s19
      %p230 = scmp.lt.s32.totalorder %s229, 255
      %s231 = scalar_select %p230, %s229, 255
      %p232 = scmp.lt.s32.totalorder %s21, 0
      %s233 = scalar_select %p232, %s21, 0
      %s234 = sadd.s32 %s233, %s231
      %s235 = smul.addr %s234, 4
      %s236 = scalar_lea.vmem %s0, %s235
      %s237 = smul.u32 64, %s19
      %s238 = smul.u32 7, %s21
      %p239 = scmp.lt.s32.totalorder %s238, 6
      %s240 = scalar_select %p239, %s238, 6
      %p241 = scmp.lt.s32.totalorder %s20, 0
      %s242 = scalar_select %p241, %s20, 0
      %s243 = sadd.s32 %s242, %s240
      %s244 = smul.addr %s243, 4
      %s245 = scalar_lea.vmem %s1, %s244
      %s246 = smul.u32 7, %s21
      %p247 = scmp.lt.s32.totalorder %s20, 0
      %s248 = scalar_select %p247, %s20, 0
      %s249 = scalar_lea.vmem %s2, %s248
      %s250 = smul.u32 64, %s19
      %p251 = scmp.lt.s32.totalorder %s250, 255
      %s252 = scalar_select %p251, %s250, 255
      %p253 = scmp.lt.s32.totalorder %s20, 0
      %s254 = scalar_select %p253, %s20, 0
      %s255 = sadd.s32 %s254, %s252
      %s256 = smul.addr %s255, 4
      %s257 = scalar_lea.vmem %s3, %s256
      %s258 = smul.u32 64, %s19
      %p260 = scmp.eq.s32.totalorder %s21, 0
      // Predicated region
      $region33: #{_matmul_bn.1} parent=31 // pred_check
        %p261 = pneg %p260
      $region34: #{_matmul_bn.1} parent=31 // pred_check_branch
        %263 = sbr.rel (%p261) target = $region36
      $region35: #{_matmul_bn.1} parent=31 // pred_region
        %vm264 = vcmask 523264
        %265 = vst.msk [vmem:[#allocation2] sm:$0xff] %vm264, 0.0
        %266 = vst.msk [vmem:[#allocation2 + $0x8] sm:$0xff] %vm264, 0.0
        %267 = vst.msk [vmem:[#allocation2 + $0x10] sm:$0xff] %vm264, 0.0
        %268 = vst.msk [vmem:[#allocation2 + $0x18] sm:$0xff] %vm264, 0.0
        %269 = vst.msk [vmem:[#allocation2 + $0x20] sm:$0xff] %vm264, 0.0
        %270 = vst.msk [vmem:[#allocation2 + $0x28] sm:$0xff] %vm264, 0.0
        %271 = vst.msk [vmem:[#allocation2 + $0x30] sm:$0xff] %vm264, 0.0
        %272 = vst.msk [vmem:[#allocation2 + $0x38] sm:$0xff] %vm264, 0.0
        %273 = vst.msk [vmem:[#allocation2 + $0x40] sm:$0xff] %vm264, 0.0
        %274 = vst.msk [vmem:[#allocation2 + $0x48] sm:$0xff] %vm264, 0.0
        %275 = vst.msk [vmem:[#allocation2 + $0x50] sm:$0xff] %vm264, 0.0
        %276 = vst.msk [vmem:[#allocation2 + $0x58] sm:$0xff] %vm264, 0.0
        %277 = vst.msk [vmem:[#allocation2 + $0x60] sm:$0xff] %vm264, 0.0
        %278 = vst.msk [vmem:[#allocation2 + $0x68] sm:$0xff] %vm264, 0.0
        %279 = vst.msk [vmem:[#allocation2 + $0x70] sm:$0xff] %vm264, 0.0
        %280 = vst.msk [vmem:[#allocation2 + $0x78] sm:$0xff] %vm264, 0.0
        %281 = vst.msk [vmem:[#allocation2 + $0x80] sm:$0xff] %vm264, 0.0
        %282 = vst.msk [vmem:[#allocation2 + $0x88] sm:$0xff] %vm264, 0.0
        %283 = vst.msk [vmem:[#allocation2 + $0x90] sm:$0xff] %vm264, 0.0
        %284 = vst.msk [vmem:[#allocation2 + $0x98] sm:$0xff] %vm264, 0.0
        %285 = vst.msk [vmem:[#allocation2 + $0xa0] sm:$0xff] %vm264, 0.0
        %286 = vst.msk [vmem:[#allocation2 + $0xa8] sm:$0xff] %vm264, 0.0
        %287 = vst.msk [vmem:[#allocation2 + $0xb0] sm:$0xff] %vm264, 0.0
        %288 = vst.msk [vmem:[#allocation2 + $0xb8] sm:$0xff] %vm264, 0.0
        %289 = vst.msk [vmem:[#allocation2 + $0xc0] sm:$0xff] %vm264, 0.0
        %290 = vst.msk [vmem:[#allocation2 + $0xc8] sm:$0xff] %vm264, 0.0
        %291 = vst.msk [vmem:[#allocation2 + $0xd0] sm:$0xff] %vm264, 0.0
        %292 = vst.msk [vmem:[#allocation2 + $0xd8] sm:$0xff] %vm264, 0.0
        %293 = vst.msk [vmem:[#allocation2 + $0xe0] sm:$0xff] %vm264, 0.0
        %294 = vst.msk [vmem:[#allocation2 + $0xe8] sm:$0xff] %vm264, 0.0
        %295 = vst.msk [vmem:[#allocation2 + $0xf0] sm:$0xff] %vm264, 0.0
        %296 = vst.msk [vmem:[#allocation2 + $0xf8] sm:$0xff] %vm264, 0.0
        %297 = vst.msk [vmem:[#allocation2 + $0x100] sm:$0xff] %vm264, 0.0
        %298 = vst.msk [vmem:[#allocation2 + $0x108] sm:$0xff] %vm264, 0.0
        %299 = vst.msk [vmem:[#allocation2 + $0x110] sm:$0xff] %vm264, 0.0
        %300 = vst.msk [vmem:[#allocation2 + $0x118] sm:$0xff] %vm264, 0.0
        %301 = vst.msk [vmem:[#allocation2 + $0x120] sm:$0xff] %vm264, 0.0
        %302 = vst.msk [vmem:[#allocation2 + $0x128] sm:$0xff] %vm264, 0.0
        %303 = vst.msk [vmem:[#allocation2 + $0x130] sm:$0xff] %vm264, 0.0
        %304 = vst.msk [vmem:[#allocation2 + $0x138] sm:$0xff] %vm264, 0.0
        %305 = vst.msk [vmem:[#allocation2 + $0x140] sm:$0xff] %vm264, 0.0
        %306 = vst.msk [vmem:[#allocation2 + $0x148] sm:$0xff] %vm264, 0.0
        %307 = vst.msk [vmem:[#allocation2 + $0x150] sm:$0xff] %vm264, 0.0
        %308 = vst.msk [vmem:[#allocation2 + $0x158] sm:$0xff] %vm264, 0.0
        %309 = vst.msk [vmem:[#allocation2 + $0x160] sm:$0xff] %vm264, 0.0
        %310 = vst.msk [vmem:[#allocation2 + $0x168] sm:$0xff] %vm264, 0.0
        %311 = vst.msk [vmem:[#allocation2 + $0x170] sm:$0xff] %vm264, 0.0
        %312 = vst.msk [vmem:[#allocation2 + $0x178] sm:$0xff] %vm264, 0.0
        %313 = vst.msk [vmem:[#allocation2 + $0x180] sm:$0xff] %vm264, 0.0
        %314 = vst.msk [vmem:[#allocation2 + $0x188] sm:$0xff] %vm264, 0.0
        %315 = vst.msk [vmem:[#allocation2 + $0x190] sm:$0xff] %vm264, 0.0
        %316 = vst.msk [vmem:[#allocation2 + $0x198] sm:$0xff] %vm264, 0.0
        %317 = vst.msk [vmem:[#allocation2 + $0x1a0] sm:$0xff] %vm264, 0.0
        %318 = vst.msk [vmem:[#allocation2 + $0x1a8] sm:$0xff] %vm264, 0.0
        %319 = vst.msk [vmem:[#allocation2 + $0x1b0] sm:$0xff] %vm264, 0.0
        %320 = vst.msk [vmem:[#allocation2 + $0x1b8] sm:$0xff] %vm264, 0.0
        %321 = vst.msk [vmem:[#allocation2 + $0x1c0] sm:$0xff] %vm264, 0.0
        %322 = vst.msk [vmem:[#allocation2 + $0x1c8] sm:$0xff] %vm264, 0.0
        %323 = vst.msk [vmem:[#allocation2 + $0x1d0] sm:$0xff] %vm264, 0.0
        %324 = vst.msk [vmem:[#allocation2 + $0x1d8] sm:$0xff] %vm264, 0.0
        %325 = vst.msk [vmem:[#allocation2 + $0x1e0] sm:$0xff] %vm264, 0.0
        %326 = vst.msk [vmem:[#allocation2 + $0x1e8] sm:$0xff] %vm264, 0.0
        %327 = vst.msk [vmem:[#allocation2 + $0x1f0] sm:$0xff] %vm264, 0.0
        %328 = vst.msk [vmem:[#allocation2 + $0x1f8] sm:$0xff] %vm264, 0.0
      $region36: #{_matmul_bn.1} parent=31 // pred_fallthru
        _
      %v329 = vld [vmem:[#allocation2] sm:$0xff]
      %v330 = vld [vmem:[#allocation2 + $0x8] sm:$0xff]
      %v331 = vld [vmem:[#allocation2 + $0x10] sm:$0xff]
      %v332 = vld [vmem:[#allocation2 + $0x18] sm:$0xff]
      %v333 = vld [vmem:[#allocation2 + $0x20] sm:$0xff]
      %v334 = vld [vmem:[#allocation2 + $0x28] sm:$0xff]
      %v335 = vld [vmem:[#allocation2 + $0x30] sm:$0xff]
      %v336 = vld [vmem:[#allocation2 + $0x38] sm:$0xff]
      %v337 = vld [vmem:[#allocation2 + $0x40] sm:$0xff]
      %v338 = vld [vmem:[#allocation2 + $0x48] sm:$0xff]
      %v339 = vld [vmem:[#allocation2 + $0x50] sm:$0xff]
      %v340 = vld [vmem:[#allocation2 + $0x58] sm:$0xff]
      %v341 = vld [vmem:[#allocation2 + $0x60] sm:$0xff]
      %v342 = vld [vmem:[#allocation2 + $0x68] sm:$0xff]
      %v343 = vld [vmem:[#allocation2 + $0x70] sm:$0xff]
      %v344 = vld [vmem:[#allocation2 + $0x78] sm:$0xff]
      %v345 = vld [vmem:[#allocation2 + $0x80] sm:$0xff]
      %v346 = vld [vmem:[#allocation2 + $0x88] sm:$0xff]
      %v347 = vld [vmem:[#allocation2 + $0x90] sm:$0xff]
      %v348 = vld [vmem:[#allocation2 + $0x98] sm:$0xff]
      %v349 = vld [vmem:[#allocation2 + $0xa0] sm:$0xff]
      %v350 = vld [vmem:[#allocation2 + $0xa8] sm:$0xff]
      %v351 = vld [vmem:[#allocation2 + $0xb0] sm:$0xff]
      %v352 = vld [vmem:[#allocation2 + $0xb8] sm:$0xff]
      %v353 = vld [vmem:[#allocation2 + $0xc0] sm:$0xff]
      %v354 = vld [vmem:[#allocation2 + $0xc8] sm:$0xff]
      %v355 = vld [vmem:[#allocation2 + $0xd0] sm:$0xff]
      %v356 = vld [vmem:[#allocation2 + $0xd8] sm:$0xff]
      %v357 = vld [vmem:[#allocation2 + $0xe0] sm:$0xff]
      %v358 = vld [vmem:[#allocation2 + $0xe8] sm:$0xff]
      %v359 = vld [vmem:[#allocation2 + $0xf0] sm:$0xff]
      %v360 = vld [vmem:[#allocation2 + $0xf8] sm:$0xff]
      %v361 = vld [vmem:[#allocation2 + $0x100] sm:$0xff]
      %v362 = vld [vmem:[#allocation2 + $0x108] sm:$0xff]
      %v363 = vld [vmem:[#allocation2 + $0x110] sm:$0xff]
      %v364 = vld [vmem:[#allocation2 + $0x118] sm:$0xff]
      %v365 = vld [vmem:[#allocation2 + $0x120] sm:$0xff]
      %v366 = vld [vmem:[#allocation2 + $0x128] sm:$0xff]
      %v367 = vld [vmem:[#allocation2 + $0x130] sm:$0xff]
      %v368 = vld [vmem:[#allocation2 + $0x138] sm:$0xff]
      %v369 = vld [vmem:[#allocation2 + $0x140] sm:$0xff]
      %v370 = vld [vmem:[#allocation2 + $0x148] sm:$0xff]
      %v371 = vld [vmem:[#allocation2 + $0x150] sm:$0xff]
      %v372 = vld [vmem:[#allocation2 + $0x158] sm:$0xff]
      %v373 = vld [vmem:[#allocation2 + $0x160] sm:$0xff]
      %v374 = vld [vmem:[#allocation2 + $0x168] sm:$0xff]
      %v375 = vld [vmem:[#allocation2 + $0x170] sm:$0xff]
      %v376 = vld [vmem:[#allocation2 + $0x178] sm:$0xff]
      %v377 = vld [vmem:[#allocation2 + $0x180] sm:$0xff]
      %v378 = vld [vmem:[#allocation2 + $0x188] sm:$0xff]
      %v379 = vld [vmem:[#allocation2 + $0x190] sm:$0xff]
      %v380 = vld [vmem:[#allocation2 + $0x198] sm:$0xff]
      %v381 = vld [vmem:[#allocation2 + $0x1a0] sm:$0xff]
      %v382 = vld [vmem:[#allocation2 + $0x1a8] sm:$0xff]
      %v383 = vld [vmem:[#allocation2 + $0x1b0] sm:$0xff]
      %v384 = vld [vmem:[#allocation2 + $0x1b8] sm:$0xff]
      %v385 = vld [vmem:[#allocation2 + $0x1c0] sm:$0xff]
      %v386 = vld [vmem:[#allocation2 + $0x1c8] sm:$0xff]
      %v387 = vld [vmem:[#allocation2 + $0x1d0] sm:$0xff]
      %v388 = vld [vmem:[#allocation2 + $0x1d8] sm:$0xff]
      %v389 = vld [vmem:[#allocation2 + $0x1e0] sm:$0xff]
      %v390 = vld [vmem:[#allocation2 + $0x1e8] sm:$0xff]
      %v391 = vld [vmem:[#allocation2 + $0x1f0] sm:$0xff]
      %v392 = vld [vmem:[#allocation2 + $0x1f8] sm:$0xff]
      %v393 = vld [vmem:[%s236] sm:$0xf]
      %v394 = vld [vmem:[%s236 + $0x4] sm:$0xf]
      %v395 = vld [vmem:[%s236 + $0x8] sm:$0xf]
      %v396 = vld [vmem:[%s236 + $0xc] sm:$0xf]
      %v397 = vld [vmem:[%s236 + $0x10] sm:$0xf]
      %v398 = vld [vmem:[%s236 + $0x14] sm:$0xf]
      %v399 = vld [vmem:[%s236 + $0x18] sm:$0xf]
      %v400 = vld [vmem:[%s236 + $0x1c] sm:$0xf]
      %v401 = vld [vmem:[%s236 + $0x20] sm:$0xf]
      %v402 = vld [vmem:[%s236 + $0x24] sm:$0xf]
      %v403 = vld [vmem:[%s236 + $0x28] sm:$0xf]
      %v404 = vld [vmem:[%s236 + $0x2c] sm:$0xf]
      %v405 = vld [vmem:[%s236 + $0x30] sm:$0xf]
      %v406 = vld [vmem:[%s236 + $0x34] sm:$0xf]
      %v407 = vld [vmem:[%s236 + $0x38] sm:$0xf]
      %v408 = vld [vmem:[%s236 + $0x3c] sm:$0xf]
      %v409 = vld [vmem:[%s236 + $0x40] sm:$0xf]
      %v410 = vld [vmem:[%s236 + $0x44] sm:$0xf]
      %v411 = vld [vmem:[%s236 + $0x48] sm:$0xf]
      %v412 = vld [vmem:[%s236 + $0x4c] sm:$0xf]
      %v413 = vld [vmem:[%s236 + $0x50] sm:$0xf]
      %v414 = vld [vmem:[%s236 + $0x54] sm:$0xf]
      %v415 = vld [vmem:[%s236 + $0x58] sm:$0xf]
      %v416 = vld [vmem:[%s236 + $0x5c] sm:$0xf]
      %v417 = vld [vmem:[%s236 + $0x60] sm:$0xf]
      %v418 = vld [vmem:[%s236 + $0x64] sm:$0xf]
      %v419 = vld [vmem:[%s236 + $0x68] sm:$0xf]
      %v420 = vld [vmem:[%s236 + $0x6c] sm:$0xf]
      %v421 = vld [vmem:[%s236 + $0x70] sm:$0xf]
      %v422 = vld [vmem:[%s236 + $0x74] sm:$0xf]
      %v423 = vld [vmem:[%s236 + $0x78] sm:$0xf]
      %v424 = vld [vmem:[%s236 + $0x7c] sm:$0xf]
      %v425 = vld [vmem:[%s236 + $0x80] sm:$0xf]
      %v426 = vld [vmem:[%s236 + $0x84] sm:$0xf]
      %v427 = vld [vmem:[%s236 + $0x88] sm:$0xf]
      %v428 = vld [vmem:[%s236 + $0x8c] sm:$0xf]
      %v429 = vld [vmem:[%s236 + $0x90] sm:$0xf]
      %v430 = vld [vmem:[%s236 + $0x94] sm:$0xf]
      %v431 = vld [vmem:[%s236 + $0x98] sm:$0xf]
      %v432 = vld [vmem:[%s236 + $0x9c] sm:$0xf]
      %v433 = vld [vmem:[%s236 + $0xa0] sm:$0xf]
      %v434 = vld [vmem:[%s236 + $0xa4] sm:$0xf]
      %v435 = vld [vmem:[%s236 + $0xa8] sm:$0xf]
      %v436 = vld [vmem:[%s236 + $0xac] sm:$0xf]
      %v437 = vld [vmem:[%s236 + $0xb0] sm:$0xf]
      %v438 = vld [vmem:[%s236 + $0xb4] sm:$0xf]
      %v439 = vld [vmem:[%s236 + $0xb8] sm:$0xf]
      %v440 = vld [vmem:[%s236 + $0xbc] sm:$0xf]
      %v441 = vld [vmem:[%s236 + $0xc0] sm:$0xf]
      %v442 = vld [vmem:[%s236 + $0xc4] sm:$0xf]
      %v443 = vld [vmem:[%s236 + $0xc8] sm:$0xf]
      %v444 = vld [vmem:[%s236 + $0xcc] sm:$0xf]
      %v445 = vld [vmem:[%s236 + $0xd0] sm:$0xf]
      %v446 = vld [vmem:[%s236 + $0xd4] sm:$0xf]
      %v447 = vld [vmem:[%s236 + $0xd8] sm:$0xf]
      %v448 = vld [vmem:[%s236 + $0xdc] sm:$0xf]
      %v449 = vld [vmem:[%s236 + $0xe0] sm:$0xf]
      %v450 = vld [vmem:[%s236 + $0xe4] sm:$0xf]
      %v451 = vld [vmem:[%s236 + $0xe8] sm:$0xf]
      %v452 = vld [vmem:[%s236 + $0xec] sm:$0xf]
      %v453 = vld [vmem:[%s236 + $0xf0] sm:$0xf]
      %v454 = vld [vmem:[%s236 + $0xf4] sm:$0xf]
      %v455 = vld [vmem:[%s236 + $0xf8] sm:$0xf]
      %v456 = vld [vmem:[%s236 + $0xfc] sm:$0xf]
      %v457 = vld [vmem:[%s245] sm:$0xf]
      %v458 = vld [vmem:[%s245 + $0x4] sm:$0xf]
      %v459 = vld [vmem:[%s245 + $0x8] sm:$0xf]
      %v460 = vld [vmem:[%s245 + $0xc] sm:$0xf]
      %v461 = vld [vmem:[%s245 + $0x10] sm:$0xf]
      %v462 = vld [vmem:[%s245 + $0x14] sm:$0xf]
      %v463 = vld [vmem:[%s245 + $0x18] sm:$0x1]
      %v528 = vunpack.c.l.b16 %v393
      %v529 = vunpack.c.l.b16 %v394
      %v530 = vunpack.c.l.b16 %v395
      %v531 = vunpack.c.l.b16 %v396
      %v532 = vunpack.c.l.b16 %v397
      %v533 = vunpack.c.l.b16 %v398
      %v534 = vunpack.c.l.b16 %v399
      %v535 = vunpack.c.l.b16 %v400
      %v536 = vunpack.c.l.b16 %v401
      %v537 = vunpack.c.l.b16 %v402
      %v538 = vunpack.c.l.b16 %v403
      %v539 = vunpack.c.l.b16 %v404
      %v540 = vunpack.c.l.b16 %v405
      %v541 = vunpack.c.l.b16 %v406
      %v542 = vunpack.c.l.b16 %v407
      %v543 = vunpack.c.l.b16 %v408
      %v544 = vunpack.c.l.b16 %v409
      %v545 = vunpack.c.l.b16 %v410
      %v546 = vunpack.c.l.b16 %v411
      %v547 = vunpack.c.l.b16 %v412
      %v548 = vunpack.c.l.b16 %v413
      %v549 = vunpack.c.l.b16 %v414
      %v550 = vunpack.c.l.b16 %v415
      %v551 = vunpack.c.l.b16 %v416
      %v552 = vunpack.c.l.b16 %v417
      %v553 = vunpack.c.l.b16 %v418
      %v554 = vunpack.c.l.b16 %v419
      %v555 = vunpack.c.l.b16 %v420
      %v556 = vunpack.c.l.b16 %v421
      %v557 = vunpack.c.l.b16 %v422
      %v558 = vunpack.c.l.b16 %v423
      %v559 = vunpack.c.l.b16 %v424
      %v560 = vunpack.c.l.b16 %v425
      %v561 = vunpack.c.l.b16 %v426
      %v562 = vunpack.c.l.b16 %v427
      %v563 = vunpack.c.l.b16 %v428
      %v564 = vunpack.c.l.b16 %v429
      %v565 = vunpack.c.l.b16 %v430
      %v566 = vunpack.c.l.b16 %v431
      %v567 = vunpack.c.l.b16 %v432
      %v568 = vunpack.c.l.b16 %v433
      %v569 = vunpack.c.l.b16 %v434
      %v570 = vunpack.c.l.b16 %v435
      %v571 = vunpack.c.l.b16 %v436
      %v572 = vunpack.c.l.b16 %v437
      %v573 = vunpack.c.l.b16 %v438
      %v574 = vunpack.c.l.b16 %v439
      %v575 = vunpack.c.l.b16 %v440
      %v576 = vunpack.c.l.b16 %v441
      %v577 = vunpack.c.l.b16 %v442
      %v578 = vunpack.c.l.b16 %v443
      %v579 = vunpack.c.l.b16 %v444
      %v580 = vunpack.c.l.b16 %v445
      %v581 = vunpack.c.l.b16 %v446
      %v582 = vunpack.c.l.b16 %v447
      %v583 = vunpack.c.l.b16 %v448
      %v584 = vunpack.c.l.b16 %v449
      %v585 = vunpack.c.l.b16 %v450
      %v586 = vunpack.c.l.b16 %v451
      %v587 = vunpack.c.l.b16 %v452
      %v588 = vunpack.c.l.b16 %v453
      %v589 = vunpack.c.l.b16 %v454
      %v590 = vunpack.c.l.b16 %v455
      %v591 = vunpack.c.l.b16 %v456
      %v592 = vpack.c.b16 %v529, %v528
      %v593 = vpack.c.b16 %v531, %v530
      %v594 = vpack.c.b16 %v533, %v532
      %v595 = vpack.c.b16 %v535, %v534
      %v596 = vpack.c.b16 %v537, %v536
      %v597 = vpack.c.b16 %v539, %v538
      %v598 = vpack.c.b16 %v541, %v540
      %v599 = vpack.c.b16 %v543, %v542
      %v600 = vpack.c.b16 %v545, %v544
      %v601 = vpack.c.b16 %v547, %v546
      %v602 = vpack.c.b16 %v549, %v548
      %v603 = vpack.c.b16 %v551, %v550
      %v604 = vpack.c.b16 %v553, %v552
      %v605 = vpack.c.b16 %v555, %v554
      %v606 = vpack.c.b16 %v557, %v556
      %v607 = vpack.c.b16 %v559, %v558
      %v608 = vpack.c.b16 %v561, %v560
      %v609 = vpack.c.b16 %v563, %v562
      %v610 = vpack.c.b16 %v565, %v564
      %v611 = vpack.c.b16 %v567, %v566
      %v612 = vpack.c.b16 %v569, %v568
      %v613 = vpack.c.b16 %v571, %v570
      %v614 = vpack.c.b16 %v573, %v572
      %v615 = vpack.c.b16 %v575, %v574
      %v616 = vpack.c.b16 %v577, %v576
      %v617 = vpack.c.b16 %v579, %v578
      %v618 = vpack.c.b16 %v581, %v580
      %v619 = vpack.c.b16 %v583, %v582
      %v620 = vpack.c.b16 %v585, %v584
      %v621 = vpack.c.b16 %v587, %v586
      %v622 = vpack.c.b16 %v589, %v588
      %v623 = vpack.c.b16 %v591, %v590
      %v631 = vunpack.c.l.b16 %v457
      %v632 = vunpack.c.l.b16 %v458
      %v633 = vunpack.c.l.b16 %v459
      %v634 = vunpack.c.l.b16 %v460
      %v635 = vunpack.c.l.b16 %v461
      %v636 = vunpack.c.l.b16 %v462
      %v637 = vunpack.c.l.b16 %v463
      %v638 = vpack.c.b16 %v632, %v631
      %v639 = vpack.c.b16 %v634, %v633
      %v640 = vpack.c.b16 %v636, %v635
      %v641 = vpack.c.b16 %v637, %v637
      %vm645 = vcmask 400384
      %v647 = vsel %vm645, %v592, 0
      %v650 = vsel %vm645, %v593, 0
      %v653 = vsel %vm645, %v594, 0
      %v656 = vsel %vm645, %v595, 0
      %v659 = vsel %vm645, %v596, 0
      %v662 = vsel %vm645, %v597, 0
      %v665 = vsel %vm645, %v598, 0
      %v668 = vsel %vm645, %v599, 0
      %v671 = vsel %vm645, %v600, 0
      %v674 = vsel %vm645, %v601, 0
      %v677 = vsel %vm645, %v602, 0
      %v680 = vsel %vm645, %v603, 0
      %v683 = vsel %vm645, %v604, 0
      %v686 = vsel %vm645, %v605, 0
      %v689 = vsel %vm645, %v606, 0
      %v692 = vsel %vm645, %v607, 0
      %v695 = vsel %vm645, %v608, 0
      %v698 = vsel %vm645, %v609, 0
      %v701 = vsel %vm645, %v610, 0
      %v704 = vsel %vm645, %v611, 0
      %v707 = vsel %vm645, %v612, 0
      %v710 = vsel %vm645, %v613, 0
      %v713 = vsel %vm645, %v614, 0
      %v716 = vsel %vm645, %v615, 0
      %v719 = vsel %vm645, %v616, 0
      %v722 = vsel %vm645, %v617, 0
      %v725 = vsel %vm645, %v618, 0
      %v728 = vsel %vm645, %v619, 0
      %v731 = vsel %vm645, %v620, 0
      %v734 = vsel %vm645, %v621, 0
      %v737 = vsel %vm645, %v622, 0
      %v740 = vsel %vm645, %v623, 0
      %vm742 = vcmask 1040384
      %v743 = vsel 0, 4294967295, 65535
      %v744 = vsel %vm742, %v743, 0
      %v746 = vand.u32 %v641, %v744
      %748 = vmatprep.subr.bf16.mxu0 0
      %749 = vmatpush1.bf16.msra.mxu0 0
      %750 = vmatprep.subr.bf16.mxu0 0
      %751 = vmatpush1.bf16.msra.mxu0 0
      %752 = vmatprep.subr.bf16.mxu0 0
      %753 = vmatpush1.bf16.msra.mxu0 0
      %754 = vmatprep.subr.bf16.mxu0 0
      %755 = vmatpush1.bf16.msra.mxu0 0
      %756 = vmatprep.subr.bf16.mxu0 0
      %757 = vmatpush1.bf16.msra.mxu0 %v746
      %758 = vmatprep.subr.bf16.mxu0 0
      %759 = vmatpush1.bf16.msra.mxu0 %v640
      %760 = vmatprep.subr.bf16.mxu0 0
      %761 = vmatpush1.bf16.msra.mxu0 %v639
      %762 = vmatprep.subr.bf16.mxu0 0
      %763 = vmatpush1.bf16.msra.mxu0 %v638
      %764 = vmatprep.subr.bf16.mxu0 0
      %765 = vmatpush2.bf16.msra.mxu0 0
      %766 = vmatprep.subr.bf16.mxu0 0
      %767 = vmatpush2.bf16.msra.mxu0 0
      %768 = vmatprep.subr.bf16.mxu0 0
      %769 = vmatpush2.bf16.msra.mxu0 0
      %770 = vmatprep.subr.bf16.mxu0 0
      %771 = vmatpush2.bf16.msra.mxu0 0
      %772 = vmatprep.subr.bf16.mxu0 0
      %773 = vmatpush2.bf16.msra.mxu0 0
      %774 = vmatprep.subr.bf16.mxu0 0
      %775 = vmatpush2.bf16.msra.mxu0 0
      %776 = vmatprep.subr.bf16.mxu0 0
      %777 = vmatpush2.bf16.msra.mxu0 0
      %778 = vmatprep.subr.bf16.mxu0 0
      %779 = vmatpush2.bf16.msra.mxu0 0
      %780 = vmatprep.mubr.bf16.mxu0 0
      %781 = vmatmul.mubr.bf16.gmra.mxu0 %v647
      %v782 = vpop.f32.mrf.mxu0
      %v783 = vadd.f32 0.0, %v782
      %v784 = vpop.f32.mrf.mxu0
      %v785 = vpop.f32.mrf.mxu0
      %v786 = vadd.f32 0.0, %v785
      %v787 = vpop.f32.mrf.mxu0
      %788 = vmatprep.mubr.bf16.mxu0 0
      %789 = vmatmul.mubr.bf16.gmra.mxu0 %v650
      %v790 = vpop.f32.mrf.mxu0
      %v791 = vadd.f32 0.0, %v790
      %v792 = vpop.f32.mrf.mxu0
      %v793 = vpop.f32.mrf.mxu0
      %v794 = vadd.f32 0.0, %v793
      %v795 = vpop.f32.mrf.mxu0
      %796 = vmatprep.mubr.bf16.mxu0 0
      %797 = vmatmul.mubr.bf16.gmra.mxu0 %v653
      %v798 = vpop.f32.mrf.mxu0
      %v799 = vadd.f32 0.0, %v798
      %v800 = vpop.f32.mrf.mxu0
      %v801 = vpop.f32.mrf.mxu0
      %v802 = vadd.f32 0.0, %v801
      %v803 = vpop.f32.mrf.mxu0
      %804 = vmatprep.mubr.bf16.mxu0 0
      %805 = vmatmul.mubr.bf16.gmra.mxu0 %v656
      %v806 = vpop.f32.mrf.mxu0
      %v807 = vadd.f32 0.0, %v806
      %v808 = vpop.f32.mrf.mxu0
      %v809 = vpop.f32.mrf.mxu0
      %v810 = vadd.f32 0.0, %v809
      %v811 = vpop.f32.mrf.mxu0
      %812 = vmatprep.mubr.bf16.mxu0 0
      %813 = vmatmul.mubr.bf16.gmra.mxu0 %v659
      %v814 = vpop.f32.mrf.mxu0
      %v815 = vadd.f32 0.0, %v814
      %v816 = vpop.f32.mrf.mxu0
      %v817 = vpop.f32.mrf.mxu0
      %v818 = vadd.f32 0.0, %v817
      %v819 = vpop.f32.mrf.mxu0
      %820 = vmatprep.mubr.bf16.mxu0 0
      %821 = vmatmul.mubr.bf16.gmra.mxu0 %v662
      %v822 = vpop.f32.mrf.mxu0
      %v823 = vadd.f32 0.0, %v822
      %v824 = vpop.f32.mrf.mxu0
      %v825 = vpop.f32.mrf.mxu0
      %v826 = vadd.f32 0.0, %v825
      %v827 = vpop.f32.mrf.mxu0
      %828 = vmatprep.mubr.bf16.mxu0 0
      %829 = vmatmul.mubr.bf16.gmra.mxu0 %v665
      %v830 = vpop.f32.mrf.mxu0
      %v831 = vadd.f32 0.0, %v830
      %v832 = vpop.f32.mrf.mxu0
      %v833 = vpop.f32.mrf.mxu0
      %v834 = vadd.f32 0.0, %v833
      %v835 = vpop.f32.mrf.mxu0
      %836 = vmatprep.mubr.bf16.mxu0 0
      %837 = vmatmul.mubr.bf16.gmra.mxu0 %v668
      %v838 = vpop.f32.mrf.mxu0
      %v839 = vadd.f32 0.0, %v838
      %v840 = vpop.f32.mrf.mxu0
      %v841 = vpop.f32.mrf.mxu0
      %v842 = vadd.f32 0.0, %v841
      %v843 = vpop.f32.mrf.mxu0
      %844 = vmatprep.mubr.bf16.mxu0 0
      %845 = vmatmul.mubr.bf16.gmra.mxu0 %v671
      %v846 = vpop.f32.mrf.mxu0
      %v847 = vadd.f32 0.0, %v846
      %v848 = vpop.f32.mrf.mxu0
      %v849 = vpop.f32.mrf.mxu0
      %v850 = vadd.f32 0.0, %v849
      %v851 = vpop.f32.mrf.mxu0
      %852 = vmatprep.mubr.bf16.mxu0 0
      %853 = vmatmul.mubr.bf16.gmra.mxu0 %v674
      %v854 = vpop.f32.mrf.mxu0
      %v855 = vadd.f32 0.0, %v854
      %v856 = vpop.f32.mrf.mxu0
      %v857 = vpop.f32.mrf.mxu0
      %v858 = vadd.f32 0.0, %v857
      %v859 = vpop.f32.mrf.mxu0
      %860 = vmatprep.mubr.bf16.mxu0 0
      %861 = vmatmul.mubr.bf16.gmra.mxu0 %v677
      %v862 = vpop.f32.mrf.mxu0
      %v863 = vadd.f32 0.0, %v862
      %v864 = vpop.f32.mrf.mxu0
      %v865 = vpop.f32.mrf.mxu0
      %v866 = vadd.f32 0.0, %v865
      %v867 = vpop.f32.mrf.mxu0
      %868 = vmatprep.mubr.bf16.mxu0 0
      %869 = vmatmul.mubr.bf16.gmra.mxu0 %v680
      %v870 = vpop.f32.mrf.mxu0
      %v871 = vadd.f32 0.0, %v870
      %v872 = vpop.f32.mrf.mxu0
      %v873 = vpop.f32.mrf.mxu0
      %v874 = vadd.f32 0.0, %v873
      %v875 = vpop.f32.mrf.mxu0
      %876 = vmatprep.mubr.bf16.mxu0 0
      %877 = vmatmul.mubr.bf16.gmra.mxu0 %v683
      %v878 = vpop.f32.mrf.mxu0
      %v879 = vadd.f32 0.0, %v878
      %v880 = vpop.f32.mrf.mxu0
      %v881 = vpop.f32.mrf.mxu0
      %v882 = vadd.f32 0.0, %v881
      %v883 = vpop.f32.mrf.mxu0
      %884 = vmatprep.mubr.bf16.mxu0 0
      %885 = vmatmul.mubr.bf16.gmra.mxu0 %v686
      %v886 = vpop.f32.mrf.mxu0
      %v887 = vadd.f32 0.0, %v886
      %v888 = vpop.f32.mrf.mxu0
      %v889 = vpop.f32.mrf.mxu0
      %v890 = vadd.f32 0.0, %v889
      %v891 = vpop.f32.mrf.mxu0
      %892 = vmatprep.mubr.bf16.mxu0 0
      %893 = vmatmul.mubr.bf16.gmra.mxu0 %v689
      %v894 = vpop.f32.mrf.mxu0
      %v895 = vadd.f32 0.0, %v894
      %v896 = vpop.f32.mrf.mxu0
      %v897 = vpop.f32.mrf.mxu0
      %v898 = vadd.f32 0.0, %v897
      %v899 = vpop.f32.mrf.mxu0
      %900 = vmatprep.mubr.bf16.mxu0 0
      %901 = vmatmul.mubr.bf16.gmra.mxu0 %v692
      %v902 = vpop.f32.mrf.mxu0
      %v903 = vadd.f32 0.0, %v902
      %v904 = vpop.f32.mrf.mxu0
      %v905 = vpop.f32.mrf.mxu0
      %v906 = vadd.f32 0.0, %v905
      %v907 = vpop.f32.mrf.mxu0
      %908 = vmatprep.mubr.bf16.mxu0 0
      %909 = vmatmul.mubr.bf16.gmra.mxu0 %v695
      %v910 = vpop.f32.mrf.mxu0
      %v911 = vadd.f32 0.0, %v910
      %v912 = vpop.f32.mrf.mxu0
      %v913 = vpop.f32.mrf.mxu0
      %v914 = vadd.f32 0.0, %v913
      %v915 = vpop.f32.mrf.mxu0
      %916 = vmatprep.mubr.bf16.mxu0 0
      %917 = vmatmul.mubr.bf16.gmra.mxu0 %v698
      %v918 = vpop.f32.mrf.mxu0
      %v919 = vadd.f32 0.0, %v918
      %v920 = vpop.f32.mrf.mxu0
      %v921 = vpop.f32.mrf.mxu0
      %v922 = vadd.f32 0.0, %v921
      %v923 = vpop.f32.mrf.mxu0
      %924 = vmatprep.mubr.bf16.mxu0 0
      %925 = vmatmul.mubr.bf16.gmra.mxu0 %v701
      %v926 = vpop.f32.mrf.mxu0
      %v927 = vadd.f32 0.0, %v926
      %v928 = vpop.f32.mrf.mxu0
      %v929 = vpop.f32.mrf.mxu0
      %v930 = vadd.f32 0.0, %v929
      %v931 = vpop.f32.mrf.mxu0
      %932 = vmatprep.mubr.bf16.mxu0 0
      %933 = vmatmul.mubr.bf16.gmra.mxu0 %v704
      %v934 = vpop.f32.mrf.mxu0
      %v935 = vadd.f32 0.0, %v934
      %v936 = vpop.f32.mrf.mxu0
      %v937 = vpop.f32.mrf.mxu0
      %v938 = vadd.f32 0.0, %v937
      %v939 = vpop.f32.mrf.mxu0
      %940 = vmatprep.mubr.bf16.mxu0 0
      %941 = vmatmul.mubr.bf16.gmra.mxu0 %v707
      %v942 = vpop.f32.mrf.mxu0
      %v943 = vadd.f32 0.0, %v942
      %v944 = vpop.f32.mrf.mxu0
      %v945 = vpop.f32.mrf.mxu0
      %v946 = vadd.f32 0.0, %v945
      %v947 = vpop.f32.mrf.mxu0
      %948 = vmatprep.mubr.bf16.mxu0 0
      %949 = vmatmul.mubr.bf16.gmra.mxu0 %v710
      %v950 = vpop.f32.mrf.mxu0
      %v951 = vadd.f32 0.0, %v950
      %v952 = vpop.f32.mrf.mxu0
      %v953 = vpop.f32.mrf.mxu0
      %v954 = vadd.f32 0.0, %v953
      %v955 = vpop.f32.mrf.mxu0
      %956 = vmatprep.mubr.bf16.mxu0 0
      %957 = vmatmul.mubr.bf16.gmra.mxu0 %v713
      %v958 = vpop.f32.mrf.mxu0
      %v959 = vadd.f32 0.0, %v958
      %v960 = vpop.f32.mrf.mxu0
      %v961 = vpop.f32.mrf.mxu0
      %v962 = vadd.f32 0.0, %v961
      %v963 = vpop.f32.mrf.mxu0
      %964 = vmatprep.mubr.bf16.mxu0 0
      %965 = vmatmul.mubr.bf16.gmra.mxu0 %v716
      %v966 = vpop.f32.mrf.mxu0
      %v967 = vadd.f32 0.0, %v966
      %v968 = vpop.f32.mrf.mxu0
      %v969 = vpop.f32.mrf.mxu0
      %v970 = vadd.f32 0.0, %v969
      %v971 = vpop.f32.mrf.mxu0
      %972 = vmatprep.mubr.bf16.mxu0 0
      %973 = vmatmul.mubr.bf16.gmra.mxu0 %v719
      %v974 = vpop.f32.mrf.mxu0
      %v975 = vadd.f32 0.0, %v974
      %v976 = vpop.f32.mrf.mxu0
      %v977 = vpop.f32.mrf.mxu0
      %v978 = vadd.f32 0.0, %v977
      %v979 = vpop.f32.mrf.mxu0
      %980 = vmatprep.mubr.bf16.mxu0 0
      %981 = vmatmul.mubr.bf16.gmra.mxu0 %v722
      %v982 = vpop.f32.mrf.mxu0
      %v983 = vadd.f32 0.0, %v982
      %v984 = vpop.f32.mrf.mxu0
      %v985 = vpop.f32.mrf.mxu0
      %v986 = vadd.f32 0.0, %v985
      %v987 = vpop.f32.mrf.mxu0
      %988 = vmatprep.mubr.bf16.mxu0 0
      %989 = vmatmul.mubr.bf16.gmra.mxu0 %v725
      %v990 = vpop.f32.mrf.mxu0
      %v991 = vadd.f32 0.0, %v990
      %v992 = vpop.f32.mrf.mxu0
      %v993 = vpop.f32.mrf.mxu0
      %v994 = vadd.f32 0.0, %v993
      %v995 = vpop.f32.mrf.mxu0
      %996 = vmatprep.mubr.bf16.mxu0 0
      %997 = vmatmul.mubr.bf16.gmra.mxu0 %v728
      %v998 = vpop.f32.mrf.mxu0
      %v999 = vadd.f32 0.0, %v998
      %v1000 = vpop.f32.mrf.mxu0
      %v1001 = vpop.f32.mrf.mxu0
      %v1002 = vadd.f32 0.0, %v1001
      %v1003 = vpop.f32.mrf.mxu0
      %1004 = vmatprep.mubr.bf16.mxu0 0
      %1005 = vmatmul.mubr.bf16.gmra.mxu0 %v731
      %v1006 = vpop.f32.mrf.mxu0
      %v1007 = vadd.f32 0.0, %v1006
      %v1008 = vpop.f32.mrf.mxu0
      %v1009 = vpop.f32.mrf.mxu0
      %v1010 = vadd.f32 0.0, %v1009
      %v1011 = vpop.f32.mrf.mxu0
      %1012 = vmatprep.mubr.bf16.mxu0 0
      %1013 = vmatmul.mubr.bf16.gmra.mxu0 %v734
      %v1014 = vpop.f32.mrf.mxu0
      %v1015 = vadd.f32 0.0, %v1014
      %v1016 = vpop.f32.mrf.mxu0
      %v1017 = vpop.f32.mrf.mxu0
      %v1018 = vadd.f32 0.0, %v1017
      %v1019 = vpop.f32.mrf.mxu0
      %1020 = vmatprep.mubr.bf16.mxu0 0
      %1021 = vmatmul.mubr.bf16.gmra.mxu0 %v737
      %v1022 = vpop.f32.mrf.mxu0
      %v1023 = vadd.f32 0.0, %v1022
      %v1024 = vpop.f32.mrf.mxu0
      %v1025 = vpop.f32.mrf.mxu0
      %v1026 = vadd.f32 0.0, %v1025
      %v1027 = vpop.f32.mrf.mxu0
      %1028 = vmatprep.mubr.bf16.mxu0 0
      %1029 = vmatmul.mubr.bf16.gmra.mxu0 %v740
      %v1030 = vpop.f32.mrf.mxu0
      %v1031 = vadd.f32 0.0, %v1030
      %v1032 = vpop.f32.mrf.mxu0
      %v1033 = vpop.f32.mrf.mxu0
      %v1034 = vadd.f32 0.0, %v1033
      %v1035 = vpop.f32.mrf.mxu0
      %1036 = vdwg.mxu0
      %v1037 = vadd.f32 %v329, %v783
      %v1038 = vadd.f32 %v330, %v786
      %v1039 = vadd.f32 %v331, %v791
      %v1040 = vadd.f32 %v332, %v794
      %v1041 = vadd.f32 %v333, %v799
      %v1042 = vadd.f32 %v334, %v802
      %v1043 = vadd.f32 %v335, %v807
      %v1044 = vadd.f32 %v336, %v810
      %v1045 = vadd.f32 %v337, %v815
      %v1046 = vadd.f32 %v338, %v818
      %v1047 = vadd.f32 %v339, %v823
      %v1048 = vadd.f32 %v340, %v826
      %v1049 = vadd.f32 %v341, %v831
      %v1050 = vadd.f32 %v342, %v834
      %v1051 = vadd.f32 %v343, %v839
      %v1052 = vadd.f32 %v344, %v842
      %v1053 = vadd.f32 %v345, %v847
      %v1054 = vadd.f32 %v346, %v850
      %v1055 = vadd.f32 %v347, %v855
      %v1056 = vadd.f32 %v348, %v858
      %v1057 = vadd.f32 %v349, %v863
      %v1058 = vadd.f32 %v350, %v866
      %v1059 = vadd.f32 %v351, %v871
      %v1060 = vadd.f32 %v352, %v874
      %v1061 = vadd.f32 %v353, %v879
      %v1062 = vadd.f32 %v354, %v882
      %v1063 = vadd.f32 %v355, %v887
      %v1064 = vadd.f32 %v356, %v890
      %v1065 = vadd.f32 %v357, %v895
      %v1066 = vadd.f32 %v358, %v898
      %v1067 = vadd.f32 %v359, %v903
      %v1068 = vadd.f32 %v360, %v906
      %v1069 = vadd.f32 %v361, %v911
      %v1070 = vadd.f32 %v362, %v914
      %v1071 = vadd.f32 %v363, %v919
      %v1072 = vadd.f32 %v364, %v922
      %v1073 = vadd.f32 %v365, %v927
      %v1074 = vadd.f32 %v366, %v930
      %v1075 = vadd.f32 %v367, %v935
      %v1076 = vadd.f32 %v368, %v938
      %v1077 = vadd.f32 %v369, %v943
      %v1078 = vadd.f32 %v370, %v946
      %v1079 = vadd.f32 %v371, %v951
      %v1080 = vadd.f32 %v372, %v954
      %v1081 = vadd.f32 %v373, %v959
      %v1082 = vadd.f32 %v374, %v962
      %v1083 = vadd.f32 %v375, %v967
      %v1084 = vadd.f32 %v376, %v970
      %v1085 = vadd.f32 %v377, %v975
      %v1086 = vadd.f32 %v378, %v978
      %v1087 = vadd.f32 %v379, %v983
      %v1088 = vadd.f32 %v380, %v986
      %v1089 = vadd.f32 %v381, %v991
      %v1090 = vadd.f32 %v382, %v994
      %v1091 = vadd.f32 %v383, %v999
      %v1092 = vadd.f32 %v384, %v1002
      %v1093 = vadd.f32 %v385, %v1007
      %v1094 = vadd.f32 %v386, %v1010
      %v1095 = vadd.f32 %v387, %v1015
      %v1096 = vadd.f32 %v388, %v1018
      %v1097 = vadd.f32 %v389, %v1023
      %v1098 = vadd.f32 %v390, %v1026
      %v1099 = vadd.f32 %v391, %v1031
      %v1100 = vadd.f32 %v392, %v1034
      %vm1101 = vcmask 523264
      %1102 = vst.msk [vmem:[#allocation2] sm:$0xff] %vm1101, %v1037
      %1103 = vst.msk [vmem:[#allocation2 + $0x8] sm:$0xff] %vm1101, %v1038
      %1104 = vst.msk [vmem:[#allocation2 + $0x10] sm:$0xff] %vm1101, %v1039
      %1105 = vst.msk [vmem:[#allocation2 + $0x18] sm:$0xff] %vm1101, %v1040
      %1106 = vst.msk [vmem:[#allocation2 + $0x20] sm:$0xff] %vm1101, %v1041
      %1107 = vst.msk [vmem:[#allocation2 + $0x28] sm:$0xff] %vm1101, %v1042
      %1108 = vst.msk [vmem:[#allocation2 + $0x30] sm:$0xff] %vm1101, %v1043
      %1109 = vst.msk [vmem:[#allocation2 + $0x38] sm:$0xff] %vm1101, %v1044
      %1110 = vst.msk [vmem:[#allocation2 + $0x40] sm:$0xff] %vm1101, %v1045
      %1111 = vst.msk [vmem:[#allocation2 + $0x48] sm:$0xff] %vm1101, %v1046
      %1112 = vst.msk [vmem:[#allocation2 + $0x50] sm:$0xff] %vm1101, %v1047
      %1113 = vst.msk [vmem:[#allocation2 + $0x58] sm:$0xff] %vm1101, %v1048
      %1114 = vst.msk [vmem:[#allocation2 + $0x60] sm:$0xff] %vm1101, %v1049
      %1115 = vst.msk [vmem:[#allocation2 + $0x68] sm:$0xff] %vm1101, %v1050
      %1116 = vst.msk [vmem:[#allocation2 + $0x70] sm:$0xff] %vm1101, %v1051
      %1117 = vst.msk [vmem:[#allocation2 + $0x78] sm:$0xff] %vm1101, %v1052
      %1118 = vst.msk [vmem:[#allocation2 + $0x80] sm:$0xff] %vm1101, %v1053
      %1119 = vst.msk [vmem:[#allocation2 + $0x88] sm:$0xff] %vm1101, %v1054
      %1120 = vst.msk [vmem:[#allocation2 + $0x90] sm:$0xff] %vm1101, %v1055
      %1121 = vst.msk [vmem:[#allocation2 + $0x98] sm:$0xff] %vm1101, %v1056
      %1122 = vst.msk [vmem:[#allocation2 + $0xa0] sm:$0xff] %vm1101, %v1057
      %1123 = vst.msk [vmem:[#allocation2 + $0xa8] sm:$0xff] %vm1101, %v1058
      %1124 = vst.msk [vmem:[#allocation2 + $0xb0] sm:$0xff] %vm1101, %v1059
      %1125 = vst.msk [vmem:[#allocation2 + $0xb8] sm:$0xff] %vm1101, %v1060
      %1126 = vst.msk [vmem:[#allocation2 + $0xc0] sm:$0xff] %vm1101, %v1061
      %1127 = vst.msk [vmem:[#allocation2 + $0xc8] sm:$0xff] %vm1101, %v1062
      %1128 = vst.msk [vmem:[#allocation2 + $0xd0] sm:$0xff] %vm1101, %v1063
      %1129 = vst.msk [vmem:[#allocation2 + $0xd8] sm:$0xff] %vm1101, %v1064
      %1130 = vst.msk [vmem:[#allocation2 + $0xe0] sm:$0xff] %vm1101, %v1065
      %1131 = vst.msk [vmem:[#allocation2 + $0xe8] sm:$0xff] %vm1101, %v1066
      %1132 = vst.msk [vmem:[#allocation2 + $0xf0] sm:$0xff] %vm1101, %v1067
      %1133 = vst.msk [vmem:[#allocation2 + $0xf8] sm:$0xff] %vm1101, %v1068
      %1134 = vst.msk [vmem:[#allocation2 + $0x100] sm:$0xff] %vm1101, %v1069
      %1135 = vst.msk [vmem:[#allocation2 + $0x108] sm:$0xff] %vm1101, %v1070
      %1136 = vst.msk [vmem:[#allocation2 + $0x110] sm:$0xff] %vm1101, %v1071
      %1137 = vst.msk [vmem:[#allocation2 + $0x118] sm:$0xff] %vm1101, %v1072
      %1138 = vst.msk [vmem:[#allocation2 + $0x120] sm:$0xff] %vm1101, %v1073
      %1139 = vst.msk [vmem:[#allocation2 + $0x128] sm:$0xff] %vm1101, %v1074
      %1140 = vst.msk [vmem:[#allocation2 + $0x130] sm:$0xff] %vm1101, %v1075
      %1141 = vst.msk [vmem:[#allocation2 + $0x138] sm:$0xff] %vm1101, %v1076
      %1142 = vst.msk [vmem:[#allocation2 + $0x140] sm:$0xff] %vm1101, %v1077
      %1143 = vst.msk [vmem:[#allocation2 + $0x148] sm:$0xff] %vm1101, %v1078
      %1144 = vst.msk [vmem:[#allocation2 + $0x150] sm:$0xff] %vm1101, %v1079
      %1145 = vst.msk [vmem:[#allocation2 + $0x158] sm:$0xff] %vm1101, %v1080
      %1146 = vst.msk [vmem:[#allocation2 + $0x160] sm:$0xff] %vm1101, %v1081
      %1147 = vst.msk [vmem:[#allocation2 + $0x168] sm:$0xff] %vm1101, %v1082
      %1148 = vst.msk [vmem:[#allocation2 + $0x170] sm:$0xff] %vm1101, %v1083
      %1149 = vst.msk [vmem:[#allocation2 + $0x178] sm:$0xff] %vm1101, %v1084
      %1150 = vst.msk [vmem:[#allocation2 + $0x180] sm:$0xff] %vm1101, %v1085
      %1151 = vst.msk [vmem:[#allocation2 + $0x188] sm:$0xff] %vm1101, %v1086
      %1152 = vst.msk [vmem:[#allocation2 + $0x190] sm:$0xff] %vm1101, %v1087
      %1153 = vst.msk [vmem:[#allocation2 + $0x198] sm:$0xff] %vm1101, %v1088
      %1154 = vst.msk [vmem:[#allocation2 + $0x1a0] sm:$0xff] %vm1101, %v1089
      %1155 = vst.msk [vmem:[#allocation2 + $0x1a8] sm:$0xff] %vm1101, %v1090
      %1156 = vst.msk [vmem:[#allocation2 + $0x1b0] sm:$0xff] %vm1101, %v1091
      %1157 = vst.msk [vmem:[#allocation2 + $0x1b8] sm:$0xff] %vm1101, %v1092
      %1158 = vst.msk [vmem:[#allocation2 + $0x1c0] sm:$0xff] %vm1101, %v1093
      %1159 = vst.msk [vmem:[#allocation2 + $0x1c8] sm:$0xff] %vm1101, %v1094
      %1160 = vst.msk [vmem:[#allocation2 + $0x1d0] sm:$0xff] %vm1101, %v1095
      %1161 = vst.msk [vmem:[#allocation2 + $0x1d8] sm:$0xff] %vm1101, %v1096
      %1162 = vst.msk [vmem:[#allocation2 + $0x1e0] sm:$0xff] %vm1101, %v1097
      %1163 = vst.msk [vmem:[#allocation2 + $0x1e8] sm:$0xff] %vm1101, %v1098
      %1164 = vst.msk [vmem:[#allocation2 + $0x1f0] sm:$0xff] %vm1101, %v1099
      %1165 = vst.msk [vmem:[#allocation2 + $0x1f8] sm:$0xff] %vm1101, %v1100
      // Predicated region
      $region37: #{_matmul_bn.1} parent=31 // pred_check
        %p1166 = pneg %p260
      $region38: #{_matmul_bn.1} parent=31 // pred_check_branch
        %1168 = sbr.rel (%p1166) target = $region40
      $region39: #{_matmul_bn.1} parent=31 // pred_region
        %v1169 = vld [vmem:[#allocation2] sm:$0xff]
        %v1170 = vld [vmem:[#allocation2 + $0x8] sm:$0xff]
        %v1171 = vld [vmem:[#allocation2 + $0x10] sm:$0xff]
        %v1172 = vld [vmem:[#allocation2 + $0x18] sm:$0xff]
        %v1173 = vld [vmem:[#allocation2 + $0x20] sm:$0xff]
        %v1174 = vld [vmem:[#allocation2 + $0x28] sm:$0xff]
        %v1175 = vld [vmem:[#allocation2 + $0x30] sm:$0xff]
        %v1176 = vld [vmem:[#allocation2 + $0x38] sm:$0xff]
        %v1177 = vld [vmem:[#allocation2 + $0x40] sm:$0xff]
        %v1178 = vld [vmem:[#allocation2 + $0x48] sm:$0xff]
        %v1179 = vld [vmem:[#allocation2 + $0x50] sm:$0xff]
        %v1180 = vld [vmem:[#allocation2 + $0x58] sm:$0xff]
        %v1181 = vld [vmem:[#allocation2 + $0x60] sm:$0xff]
        %v1182 = vld [vmem:[#allocation2 + $0x68] sm:$0xff]
        %v1183 = vld [vmem:[#allocation2 + $0x70] sm:$0xff]
        %v1184 = vld [vmem:[#allocation2 + $0x78] sm:$0xff]
        %v1185 = vld [vmem:[#allocation2 + $0x80] sm:$0xff]
        %v1186 = vld [vmem:[#allocation2 + $0x88] sm:$0xff]
        %v1187 = vld [vmem:[#allocation2 + $0x90] sm:$0xff]
        %v1188 = vld [vmem:[#allocation2 + $0x98] sm:$0xff]
        %v1189 = vld [vmem:[#allocation2 + $0xa0] sm:$0xff]
        %v1190 = vld [vmem:[#allocation2 + $0xa8] sm:$0xff]
        %v1191 = vld [vmem:[#allocation2 + $0xb0] sm:$0xff]
        %v1192 = vld [vmem:[#allocation2 + $0xb8] sm:$0xff]
        %v1193 = vld [vmem:[#allocation2 + $0xc0] sm:$0xff]
        %v1194 = vld [vmem:[#allocation2 + $0xc8] sm:$0xff]
        %v1195 = vld [vmem:[#allocation2 + $0xd0] sm:$0xff]
        %v1196 = vld [vmem:[#allocation2 + $0xd8] sm:$0xff]
        %v1197 = vld [vmem:[#allocation2 + $0xe0] sm:$0xff]
        %v1198 = vld [vmem:[#allocation2 + $0xe8] sm:$0xff]
        %v1199 = vld [vmem:[#allocation2 + $0xf0] sm:$0xff]
        %v1200 = vld [vmem:[#allocation2 + $0xf8] sm:$0xff]
        %v1201 = vld [vmem:[#allocation2 + $0x100] sm:$0xff]
        %v1202 = vld [vmem:[#allocation2 + $0x108] sm:$0xff]
        %v1203 = vld [vmem:[#allocation2 + $0x110] sm:$0xff]
        %v1204 = vld [vmem:[#allocation2 + $0x118] sm:$0xff]
        %v1205 = vld [vmem:[#allocation2 + $0x120] sm:$0xff]
        %v1206 = vld [vmem:[#allocation2 + $0x128] sm:$0xff]
        %v1207 = vld [vmem:[#allocation2 + $0x130] sm:$0xff]
        %v1208 = vld [vmem:[#allocation2 + $0x138] sm:$0xff]
        %v1209 = vld [vmem:[#allocation2 + $0x140] sm:$0xff]
        %v1210 = vld [vmem:[#allocation2 + $0x148] sm:$0xff]
        %v1211 = vld [vmem:[#allocation2 + $0x150] sm:$0xff]
        %v1212 = vld [vmem:[#allocation2 + $0x158] sm:$0xff]
        %v1213 = vld [vmem:[#allocation2 + $0x160] sm:$0xff]
        %v1214 = vld [vmem:[#allocation2 + $0x168] sm:$0xff]
        %v1215 = vld [vmem:[#allocation2 + $0x170] sm:$0xff]
        %v1216 = vld [vmem:[#allocation2 + $0x178] sm:$0xff]
        %v1217 = vld [vmem:[#allocation2 + $0x180] sm:$0xff]
        %v1218 = vld [vmem:[#allocation2 + $0x188] sm:$0xff]
        %v1219 = vld [vmem:[#allocation2 + $0x190] sm:$0xff]
        %v1220 = vld [vmem:[#allocation2 + $0x198] sm:$0xff]
        %v1221 = vld [vmem:[#allocation2 + $0x1a0] sm:$0xff]
        %v1222 = vld [vmem:[#allocation2 + $0x1a8] sm:$0xff]
        %v1223 = vld [vmem:[#allocation2 + $0x1b0] sm:$0xff]
        %v1224 = vld [vmem:[#allocation2 + $0x1b8] sm:$0xff]
        %v1225 = vld [vmem:[#allocation2 + $0x1c0] sm:$0xff]
        %v1226 = vld [vmem:[#allocation2 + $0x1c8] sm:$0xff]
        %v1227 = vld [vmem:[#allocation2 + $0x1d0] sm:$0xff]
        %v1228 = vld [vmem:[#allocation2 + $0x1d8] sm:$0xff]
        %v1229 = vld [vmem:[#allocation2 + $0x1e0] sm:$0xff]
        %v1230 = vld [vmem:[#allocation2 + $0x1e8] sm:$0xff]
        %v1231 = vld [vmem:[#allocation2 + $0x1f0] sm:$0xff]
        %v1232 = vld [vmem:[#allocation2 + $0x1f8] sm:$0xff]
        %v1233 = vld [vmem:[%s249] sm:$0x1]
        %v1235 = vlaneseq
        %v1236 = vshrl.u32 %v1235, 7
        %v1237 = vsub.s32 0, %v1236
        %v1238 = vrot.slane %v1233, %v1237
        %v1240 = vadd.f32 %v1169, %v1238
        %v1241 = vadd.f32 %v1170, %v1238
        %v1242 = vadd.f32 %v1171, %v1238
        %v1243 = vadd.f32 %v1172, %v1238
        %v1244 = vadd.f32 %v1173, %v1238
        %v1245 = vadd.f32 %v1174, %v1238
        %v1246 = vadd.f32 %v1175, %v1238
        %v1247 = vadd.f32 %v1176, %v1238
        %v1248 = vadd.f32 %v1177, %v1238
        %v1249 = vadd.f32 %v1178, %v1238
        %v1250 = vadd.f32 %v1179, %v1238
        %v1251 = vadd.f32 %v1180, %v1238
        %v1252 = vadd.f32 %v1181, %v1238
        %v1253 = vadd.f32 %v1182, %v1238
        %v1254 = vadd.f32 %v1183, %v1238
        %v1255 = vadd.f32 %v1184, %v1238
        %v1256 = vadd.f32 %v1185, %v1238
        %v1257 = vadd.f32 %v1186, %v1238
        %v1258 = vadd.f32 %v1187, %v1238
        %v1259 = vadd.f32 %v1188, %v1238
        %v1260 = vadd.f32 %v1189, %v1238
        %v1261 = vadd.f32 %v1190, %v1238
        %v1262 = vadd.f32 %v1191, %v1238
        %v1263 = vadd.f32 %v1192, %v1238
        %v1264 = vadd.f32 %v1193, %v1238
        %v1265 = vadd.f32 %v1194, %v1238
        %v1266 = vadd.f32 %v1195, %v1238
        %v1267 = vadd.f32 %v1196, %v1238
        %v1268 = vadd.f32 %v1197, %v1238
        %v1269 = vadd.f32 %v1198, %v1238
        %v1270 = vadd.f32 %v1199, %v1238
        %v1271 = vadd.f32 %v1200, %v1238
        %v1272 = vadd.f32 %v1201, %v1238
        %v1273 = vadd.f32 %v1202, %v1238
        %v1274 = vadd.f32 %v1203, %v1238
        %v1275 = vadd.f32 %v1204, %v1238
        %v1276 = vadd.f32 %v1205, %v1238
        %v1277 = vadd.f32 %v1206, %v1238
        %v1278 = vadd.f32 %v1207, %v1238
        %v1279 = vadd.f32 %v1208, %v1238
        %v1280 = vadd.f32 %v1209, %v1238
        %v1281 = vadd.f32 %v1210, %v1238
        %v1282 = vadd.f32 %v1211, %v1238
        %v1283 = vadd.f32 %v1212, %v1238
        %v1284 = vadd.f32 %v1213, %v1238
        %v1285 = vadd.f32 %v1214, %v1238
        %v1286 = vadd.f32 %v1215, %v1238
        %v1287 = vadd.f32 %v1216, %v1238
        %v1288 = vadd.f32 %v1217, %v1238
        %v1289 = vadd.f32 %v1218, %v1238
        %v1290 = vadd.f32 %v1219, %v1238
        %v1291 = vadd.f32 %v1220, %v1238
        %v1292 = vadd.f32 %v1221, %v1238
        %v1293 = vadd.f32 %v1222, %v1238
        %v1294 = vadd.f32 %v1223, %v1238
        %v1295 = vadd.f32 %v1224, %v1238
        %v1296 = vadd.f32 %v1225, %v1238
        %v1297 = vadd.f32 %v1226, %v1238
        %v1298 = vadd.f32 %v1227, %v1238
        %v1299 = vadd.f32 %v1228, %v1238
        %v1300 = vadd.f32 %v1229, %v1238
        %v1301 = vadd.f32 %v1230, %v1238
        %v1302 = vadd.f32 %v1231, %v1238
        %v1303 = vadd.f32 %v1232, %v1238
        %v1304 = vmax.f32 %v1240, 0.0
        %v1305 = vmax.f32 %v1241, 0.0
        %v1306 = vmax.f32 %v1242, 0.0
        %v1307 = vmax.f32 %v1243, 0.0
        %v1308 = vmax.f32 %v1244, 0.0
        %v1309 = vmax.f32 %v1245, 0.0
        %v1310 = vmax.f32 %v1246, 0.0
        %v1311 = vmax.f32 %v1247, 0.0
        %v1312 = vmax.f32 %v1248, 0.0
        %v1313 = vmax.f32 %v1249, 0.0
        %v1314 = vmax.f32 %v1250, 0.0
        %v1315 = vmax.f32 %v1251, 0.0
        %v1316 = vmax.f32 %v1252, 0.0
        %v1317 = vmax.f32 %v1253, 0.0
        %v1318 = vmax.f32 %v1254, 0.0
        %v1319 = vmax.f32 %v1255, 0.0
        %v1320 = vmax.f32 %v1256, 0.0
        %v1321 = vmax.f32 %v1257, 0.0
        %v1322 = vmax.f32 %v1258, 0.0
        %v1323 = vmax.f32 %v1259, 0.0
        %v1324 = vmax.f32 %v1260, 0.0
        %v1325 = vmax.f32 %v1261, 0.0
        %v1326 = vmax.f32 %v1262, 0.0
        %v1327 = vmax.f32 %v1263, 0.0
        %v1328 = vmax.f32 %v1264, 0.0
        %v1329 = vmax.f32 %v1265, 0.0
        %v1330 = vmax.f32 %v1266, 0.0
        %v1331 = vmax.f32 %v1267, 0.0
        %v1332 = vmax.f32 %v1268, 0.0
        %v1333 = vmax.f32 %v1269, 0.0
        %v1334 = vmax.f32 %v1270, 0.0
        %v1335 = vmax.f32 %v1271, 0.0
        %v1336 = vmax.f32 %v1272, 0.0
        %v1337 = vmax.f32 %v1273, 0.0
        %v1338 = vmax.f32 %v1274, 0.0
        %v1339 = vmax.f32 %v1275, 0.0
        %v1340 = vmax.f32 %v1276, 0.0
        %v1341 = vmax.f32 %v1277, 0.0
        %v1342 = vmax.f32 %v1278, 0.0
        %v1343 = vmax.f32 %v1279, 0.0
        %v1344 = vmax.f32 %v1280, 0.0
        %v1345 = vmax.f32 %v1281, 0.0
        %v1346 = vmax.f32 %v1282, 0.0
        %v1347 = vmax.f32 %v1283, 0.0
        %v1348 = vmax.f32 %v1284, 0.0
        %v1349 = vmax.f32 %v1285, 0.0
        %v1350 = vmax.f32 %v1286, 0.0
        %v1351 = vmax.f32 %v1287, 0.0
        %v1352 = vmax.f32 %v1288, 0.0
        %v1353 = vmax.f32 %v1289, 0.0
        %v1354 = vmax.f32 %v1290, 0.0
        %v1355 = vmax.f32 %v1291, 0.0
        %v1356 = vmax.f32 %v1292, 0.0
        %v1357 = vmax.f32 %v1293, 0.0
        %v1358 = vmax.f32 %v1294, 0.0
        %v1359 = vmax.f32 %v1295, 0.0
        %v1360 = vmax.f32 %v1296, 0.0
        %v1361 = vmax.f32 %v1297, 0.0
        %v1362 = vmax.f32 %v1298, 0.0
        %v1363 = vmax.f32 %v1299, 0.0
        %v1364 = vmax.f32 %v1300, 0.0
        %v1365 = vmax.f32 %v1301, 0.0
        %v1366 = vmax.f32 %v1302, 0.0
        %v1367 = vmax.f32 %v1303, 0.0
        %v1368 = vpack.c.bf16 %v1305, %v1304
        %v1369 = vpack.c.bf16 %v1307, %v1306
        %v1370 = vpack.c.bf16 %v1309, %v1308
        %v1371 = vpack.c.bf16 %v1311, %v1310
        %v1372 = vpack.c.bf16 %v1313, %v1312
        %v1373 = vpack.c.bf16 %v1315, %v1314
        %v1374 = vpack.c.bf16 %v1317, %v1316
        %v1375 = vpack.c.bf16 %v1319, %v1318
        %v1376 = vpack.c.bf16 %v1321, %v1320
        %v1377 = vpack.c.bf16 %v1323, %v1322
        %v1378 = vpack.c.bf16 %v1325, %v1324
        %v1379 = vpack.c.bf16 %v1327, %v1326
        %v1380 = vpack.c.bf16 %v1329, %v1328
        %v1381 = vpack.c.bf16 %v1331, %v1330
        %v1382 = vpack.c.bf16 %v1333, %v1332
        %v1383 = vpack.c.bf16 %v1335, %v1334
        %v1384 = vpack.c.bf16 %v1337, %v1336
        %v1385 = vpack.c.bf16 %v1339, %v1338
        %v1386 = vpack.c.bf16 %v1341, %v1340
        %v1387 = vpack.c.bf16 %v1343, %v1342
        %v1388 = vpack.c.bf16 %v1345, %v1344
        %v1389 = vpack.c.bf16 %v1347, %v1346
        %v1390 = vpack.c.bf16 %v1349, %v1348
        %v1391 = vpack.c.bf16 %v1351, %v1350
        %v1392 = vpack.c.bf16 %v1353, %v1352
        %v1393 = vpack.c.bf16 %v1355, %v1354
        %v1394 = vpack.c.bf16 %v1357, %v1356
        %v1395 = vpack.c.bf16 %v1359, %v1358
        %v1396 = vpack.c.bf16 %v1361, %v1360
        %v1397 = vpack.c.bf16 %v1363, %v1362
        %v1398 = vpack.c.bf16 %v1365, %v1364
        %v1399 = vpack.c.bf16 %v1367, %v1366
        %v1432 = vunpack.c.l.b16 %v1368
        %v1433 = vunpack.c.h.b16 %v1368
        %v1434 = vunpack.c.l.b16 %v1369
        %v1435 = vunpack.c.h.b16 %v1369
        %v1436 = vunpack.c.l.b16 %v1370
        %v1437 = vunpack.c.h.b16 %v1370
        %v1438 = vunpack.c.l.b16 %v1371
        %v1439 = vunpack.c.h.b16 %v1371
        %v1440 = vunpack.c.l.b16 %v1372
        %v1441 = vunpack.c.h.b16 %v1372
        %v1442 = vunpack.c.l.b16 %v1373
        %v1443 = vunpack.c.h.b16 %v1373
        %v1444 = vunpack.c.l.b16 %v1374
        %v1445 = vunpack.c.h.b16 %v1374
        %v1446 = vunpack.c.l.b16 %v1375
        %v1447 = vunpack.c.h.b16 %v1375
        %v1448 = vunpack.c.l.b16 %v1376
        %v1449 = vunpack.c.h.b16 %v1376
        %v1450 = vunpack.c.l.b16 %v1377
        %v1451 = vunpack.c.h.b16 %v1377
        %v1452 = vunpack.c.l.b16 %v1378
        %v1453 = vunpack.c.h.b16 %v1378
        %v1454 = vunpack.c.l.b16 %v1379
        %v1455 = vunpack.c.h.b16 %v1379
        %v1456 = vunpack.c.l.b16 %v1380
        %v1457 = vunpack.c.h.b16 %v1380
        %v1458 = vunpack.c.l.b16 %v1381
        %v1459 = vunpack.c.h.b16 %v1381
        %v1460 = vunpack.c.l.b16 %v1382
        %v1461 = vunpack.c.h.b16 %v1382
        %v1462 = vunpack.c.l.b16 %v1383
        %v1463 = vunpack.c.h.b16 %v1383
        %v1464 = vunpack.c.l.b16 %v1384
        %v1465 = vunpack.c.h.b16 %v1384
        %v1466 = vunpack.c.l.b16 %v1385
        %v1467 = vunpack.c.h.b16 %v1385
        %v1468 = vunpack.c.l.b16 %v1386
        %v1469 = vunpack.c.h.b16 %v1386
        %v1470 = vunpack.c.l.b16 %v1387
        %v1471 = vunpack.c.h.b16 %v1387
        %v1472 = vunpack.c.l.b16 %v1388
        %v1473 = vunpack.c.h.b16 %v1388
        %v1474 = vunpack.c.l.b16 %v1389
        %v1475 = vunpack.c.h.b16 %v1389
        %v1476 = vunpack.c.l.b16 %v1390
        %v1477 = vunpack.c.h.b16 %v1390
        %v1478 = vunpack.c.l.b16 %v1391
        %v1479 = vunpack.c.h.b16 %v1391
        %v1480 = vunpack.c.l.b16 %v1392
        %v1481 = vunpack.c.h.b16 %v1392
        %v1482 = vunpack.c.l.b16 %v1393
        %v1483 = vunpack.c.h.b16 %v1393
        %v1484 = vunpack.c.l.b16 %v1394
        %v1485 = vunpack.c.h.b16 %v1394
        %v1486 = vunpack.c.l.b16 %v1395
        %v1487 = vunpack.c.h.b16 %v1395
        %v1488 = vunpack.c.l.b16 %v1396
        %v1489 = vunpack.c.h.b16 %v1396
        %v1490 = vunpack.c.l.b16 %v1397
        %v1491 = vunpack.c.h.b16 %v1397
        %v1492 = vunpack.c.l.b16 %v1398
        %v1493 = vunpack.c.h.b16 %v1398
        %v1494 = vunpack.c.l.b16 %v1399
        %v1495 = vunpack.c.h.b16 %v1399
        %v1496 = vpack.c.b16 %v1432, %v1432
        %v1497 = vpack.c.b16 %v1433, %v1433
        %v1498 = vpack.c.b16 %v1434, %v1434
        %v1499 = vpack.c.b16 %v1435, %v1435
        %v1500 = vpack.c.b16 %v1436, %v1436
        %v1501 = vpack.c.b16 %v1437, %v1437
        %v1502 = vpack.c.b16 %v1438, %v1438
        %v1503 = vpack.c.b16 %v1439, %v1439
        %v1504 = vpack.c.b16 %v1440, %v1440
        %v1505 = vpack.c.b16 %v1441, %v1441
        %v1506 = vpack.c.b16 %v1442, %v1442
        %v1507 = vpack.c.b16 %v1443, %v1443
        %v1508 = vpack.c.b16 %v1444, %v1444
        %v1509 = vpack.c.b16 %v1445, %v1445
        %v1510 = vpack.c.b16 %v1446, %v1446
        %v1511 = vpack.c.b16 %v1447, %v1447
        %v1512 = vpack.c.b16 %v1448, %v1448
        %v1513 = vpack.c.b16 %v1449, %v1449
        %v1514 = vpack.c.b16 %v1450, %v1450
        %v1515 = vpack.c.b16 %v1451, %v1451
        %v1516 = vpack.c.b16 %v1452, %v1452
        %v1517 = vpack.c.b16 %v1453, %v1453
        %v1518 = vpack.c.b16 %v1454, %v1454
        %v1519 = vpack.c.b16 %v1455, %v1455
        %v1520 = vpack.c.b16 %v1456, %v1456
        %v1521 = vpack.c.b16 %v1457, %v1457
        %v1522 = vpack.c.b16 %v1458, %v1458
        %v1523 = vpack.c.b16 %v1459, %v1459
        %v1524 = vpack.c.b16 %v1460, %v1460
        %v1525 = vpack.c.b16 %v1461, %v1461
        %v1526 = vpack.c.b16 %v1462, %v1462
        %v1527 = vpack.c.b16 %v1463, %v1463
        %v1528 = vpack.c.b16 %v1464, %v1464
        %v1529 = vpack.c.b16 %v1465, %v1465
        %v1530 = vpack.c.b16 %v1466, %v1466
        %v1531 = vpack.c.b16 %v1467, %v1467
        %v1532 = vpack.c.b16 %v1468, %v1468
        %v1533 = vpack.c.b16 %v1469, %v1469
        %v1534 = vpack.c.b16 %v1470, %v1470
        %v1535 = vpack.c.b16 %v1471, %v1471
        %v1536 = vpack.c.b16 %v1472, %v1472
        %v1537 = vpack.c.b16 %v1473, %v1473
        %v1538 = vpack.c.b16 %v1474, %v1474
        %v1539 = vpack.c.b16 %v1475, %v1475
        %v1540 = vpack.c.b16 %v1476, %v1476
        %v1541 = vpack.c.b16 %v1477, %v1477
        %v1542 = vpack.c.b16 %v1478, %v1478
        %v1543 = vpack.c.b16 %v1479, %v1479
        %v1544 = vpack.c.b16 %v1480, %v1480
        %v1545 = vpack.c.b16 %v1481, %v1481
        %v1546 = vpack.c.b16 %v1482, %v1482
        %v1547 = vpack.c.b16 %v1483, %v1483
        %v1548 = vpack.c.b16 %v1484, %v1484
        %v1549 = vpack.c.b16 %v1485, %v1485
        %v1550 = vpack.c.b16 %v1486, %v1486
        %v1551 = vpack.c.b16 %v1487, %v1487
        %v1552 = vpack.c.b16 %v1488, %v1488
        %v1553 = vpack.c.b16 %v1489, %v1489
        %v1554 = vpack.c.b16 %v1490, %v1490
        %v1555 = vpack.c.b16 %v1491, %v1491
        %v1556 = vpack.c.b16 %v1492, %v1492
        %v1557 = vpack.c.b16 %v1493, %v1493
        %v1558 = vpack.c.b16 %v1494, %v1494
        %v1559 = vpack.c.b16 %v1495, %v1495
        %vm1624 = vcmask 519168
        %1625 = vst.msk [vmem:[%s257] sm:$0xf] %vm1624, %v1496
        %1626 = vst.msk [vmem:[%s257 + $0x4] sm:$0xf] %vm1624, %v1497
        %1627 = vst.msk [vmem:[%s257 + $0x8] sm:$0xf] %vm1624, %v1498
        %1628 = vst.msk [vmem:[%s257 + $0xc] sm:$0xf] %vm1624, %v1499
        %1629 = vst.msk [vmem:[%s257 + $0x10] sm:$0xf] %vm1624, %v1500
        %1630 = vst.msk [vmem:[%s257 + $0x14] sm:$0xf] %vm1624, %v1501
        %1631 = vst.msk [vmem:[%s257 + $0x18] sm:$0xf] %vm1624, %v1502
        %1632 = vst.msk [vmem:[%s257 + $0x1c] sm:$0xf] %vm1624, %v1503
        %1633 = vst.msk [vmem:[%s257 + $0x20] sm:$0xf] %vm1624, %v1504
        %1634 = vst.msk [vmem:[%s257 + $0x24] sm:$0xf] %vm1624, %v1505
        %1635 = vst.msk [vmem:[%s257 + $0x28] sm:$0xf] %vm1624, %v1506
        %1636 = vst.msk [vmem:[%s257 + $0x2c] sm:$0xf] %vm1624, %v1507
        %1637 = vst.msk [vmem:[%s257 + $0x30] sm:$0xf] %vm1624, %v1508
        %1638 = vst.msk [vmem:[%s257 + $0x34] sm:$0xf] %vm1624, %v1509
        %1639 = vst.msk [vmem:[%s257 + $0x38] sm:$0xf] %vm1624, %v1510
        %1640 = vst.msk [vmem:[%s257 + $0x3c] sm:$0xf] %vm1624, %v1511
        %1641 = vst.msk [vmem:[%s257 + $0x40] sm:$0xf] %vm1624, %v1512
        %1642 = vst.msk [vmem:[%s257 + $0x44] sm:$0xf] %vm1624, %v1513
        %1643 = vst.msk [vmem:[%s257 + $0x48] sm:$0xf] %vm1624, %v1514
        %1644 = vst.msk [vmem:[%s257 + $0x4c] sm:$0xf] %vm1624, %v1515
        %1645 = vst.msk [vmem:[%s257 + $0x50] sm:$0xf] %vm1624, %v1516
        %1646 = vst.msk [vmem:[%s257 + $0x54] sm:$0xf] %vm1624, %v1517
        %1647 = vst.msk [vmem:[%s257 + $0x58] sm:$0xf] %vm1624, %v1518
        %1648 = vst.msk [vmem:[%s257 + $0x5c] sm:$0xf] %vm1624, %v1519
        %1649 = vst.msk [vmem:[%s257 + $0x60] sm:$0xf] %vm1624, %v1520
        %1650 = vst.msk [vmem:[%s257 + $0x64] sm:$0xf] %vm1624, %v1521
        %1651 = vst.msk [vmem:[%s257 + $0x68] sm:$0xf] %vm1624, %v1522
        %1652 = vst.msk [vmem:[%s257 + $0x6c] sm:$0xf] %vm1624, %v1523
        %1653 = vst.msk [vmem:[%s257 + $0x70] sm:$0xf] %vm1624, %v1524
        %1654 = vst.msk [vmem:[%s257 + $0x74] sm:$0xf] %vm1624, %v1525
        %1655 = vst.msk [vmem:[%s257 + $0x78] sm:$0xf] %vm1624, %v1526
        %1656 = vst.msk [vmem:[%s257 + $0x7c] sm:$0xf] %vm1624, %v1527
        %1657 = vst.msk [vmem:[%s257 + $0x80] sm:$0xf] %vm1624, %v1528
        %1658 = vst.msk [vmem:[%s257 + $0x84] sm:$0xf] %vm1624, %v1529
        %1659 = vst.msk [vmem:[%s257 + $0x88] sm:$0xf] %vm1624, %v1530
        %1660 = vst.msk [vmem:[%s257 + $0x8c] sm:$0xf] %vm1624, %v1531
        %1661 = vst.msk [vmem:[%s257 + $0x90] sm:$0xf] %vm1624, %v1532
        %1662 = vst.msk [vmem:[%s257 + $0x94] sm:$0xf] %vm1624, %v1533
        %1663 = vst.msk [vmem:[%s257 + $0x98] sm:$0xf] %vm1624, %v1534
        %1664 = vst.msk [vmem:[%s257 + $0x9c] sm:$0xf] %vm1624, %v1535
        %1665 = vst.msk [vmem:[%s257 + $0xa0] sm:$0xf] %vm1624, %v1536
        %1666 = vst.msk [vmem:[%s257 + $0xa4] sm:$0xf] %vm1624, %v1537
        %1667 = vst.msk [vmem:[%s257 + $0xa8] sm:$0xf] %vm1624, %v1538
        %1668 = vst.msk [vmem:[%s257 + $0xac] sm:$0xf] %vm1624, %v1539
        %1669 = vst.msk [vmem:[%s257 + $0xb0] sm:$0xf] %vm1624, %v1540
        %1670 = vst.msk [vmem:[%s257 + $0xb4] sm:$0xf] %vm1624, %v1541
        %1671 = vst.msk [vmem:[%s257 + $0xb8] sm:$0xf] %vm1624, %v1542
        %1672 = vst.msk [vmem:[%s257 + $0xbc] sm:$0xf] %vm1624, %v1543
        %1673 = vst.msk [vmem:[%s257 + $0xc0] sm:$0xf] %vm1624, %v1544
        %1674 = vst.msk [vmem:[%s257 + $0xc4] sm:$0xf] %vm1624, %v1545
        %1675 = vst.msk [vmem:[%s257 + $0xc8] sm:$0xf] %vm1624, %v1546
        %1676 = vst.msk [vmem:[%s257 + $0xcc] sm:$0xf] %vm1624, %v1547
        %1677 = vst.msk [vmem:[%s257 + $0xd0] sm:$0xf] %vm1624, %v1548
        %1678 = vst.msk [vmem:[%s257 + $0xd4] sm:$0xf] %vm1624, %v1549
        %1679 = vst.msk [vmem:[%s257 + $0xd8] sm:$0xf] %vm1624, %v1550
        %1680 = vst.msk [vmem:[%s257 + $0xdc] sm:$0xf] %vm1624, %v1551
        %1681 = vst.msk [vmem:[%s257 + $0xe0] sm:$0xf] %vm1624, %v1552
        %1682 = vst.msk [vmem:[%s257 + $0xe4] sm:$0xf] %vm1624, %v1553
        %1683 = vst.msk [vmem:[%s257 + $0xe8] sm:$0xf] %vm1624, %v1554
        %1684 = vst.msk [vmem:[%s257 + $0xec] sm:$0xf] %vm1624, %v1555
        %1685 = vst.msk [vmem:[%s257 + $0xf0] sm:$0xf] %vm1624, %v1556
        %1686 = vst.msk [vmem:[%s257 + $0xf4] sm:$0xf] %vm1624, %v1557
        %1687 = vst.msk [vmem:[%s257 + $0xf8] sm:$0xf] %vm1624, %v1558
        %1688 = vst.msk [vmem:[%s257 + $0xfc] sm:$0xf] %vm1624, %v1559
      $region40: #{_matmul_bn.1} parent=31 // pred_fallthru
        _
      %s1689 = smul.u32 64, %s19
      %p1690 = scmp.lt.s32.totalorder %s1689, 255
      %s1691 = scalar_select %p1690, %s1689, 255
      %p1692 = scmp.lt.s32.totalorder %s20, 0
      %s1693 = scalar_select %p1692, %s20, 0
      %s1694 = sadd.s32 %s1693, %s1691
      %s1695 = smul.addr %s1694, 4
      %s1696 = scalar_lea.vmem %s3, %s1695
      // Predicated region
      $region41: #{_matmul_bn.1} parent=31 // pred_check
        %p1697 = pneg %p135
      $region42: #{_matmul_bn.1} parent=31 // pred_check_branch
        %1699 = sbr.rel (%p1697) target = $region44
      $region43: #{_matmul_bn.1} parent=31 // pred_region
        %s1700 = smul.u32 64, %s19
      $region44: #{_matmul_bn.1} parent=31 // pred_fallthru
        _
    $region32: #{_matmul_bn.1} parent=5 // pred_fallthru
      _
    %p1701 = scmp.le.s32.totalorder 2, %s9
    // Predicated region
    $region45: #{_matmul_bn.1} parent=5 // pred_check
      %p1702 = pneg %p1701
    $region46: #{_matmul_bn.1} parent=5 // pred_check_branch
      %1704 = sbr.rel (%p1702) target = $region48
    $region47: #{_matmul_bn.1} parent=5 // pred_region
      %s1705 = ssub.s32 %s9, 2
      // Predicated region
      $region49: #{_matmul_bn.1} parent=47 // pred_check
        %p1706 = pneg %p141
      $region50: #{_matmul_bn.1} parent=47 // pred_check_branch
        %1708 = sbr.rel (%p1706) target = $region52
      $region51: #{_matmul_bn.1} parent=47 // pred_region
        %s1709 = smul.u32 64, %s22
        %p1710 = scmp.lt.s32.totalorder %s1709, 255
        %s1711 = scalar_select %p1710, %s1709, 255
        %p1712 = scmp.lt.s32.totalorder %s23, 0
        %s1713 = scalar_select %p1712, %s23, 0
        %s1714 = sadd.s32 %s1713, %s1711
        %s1715 = smul.addr %s1714, 4
        %s1716 = scalar_lea.vmem %s3, %s1715
      $region52: #{_matmul_bn.1} parent=47 // pred_fallthru
        _
    $region48: #{_matmul_bn.1} parent=5 // pred_fallthru
      _
  $region6: #{_matmul_bn.1} parent=0 // loop_footer
    %s13 = sadd.s32 1, %s9
  $region7: #{_matmul_bn.1} parent=0 // loop_footer_branch
    %8 = sbr.rel target = $region3
  $region8: #{_matmul_bn.1} parent=0 // loop_exit
    _

</llo_original>
